<compile_context>
chip_gen: v7x
topology: tpu7x:2x2x1
jax: 0.10.0
libtpu: 0.0.40
codegen_flags: <defaults>
</compile_context>

<pallas_src>
import jax
import jax.numpy as jnp
from jax.experimental import pallas as pl
from jax.experimental.pallas import tpu as pltpu


def _round_up(x, m):
    return ((x + m - 1) // m) * m


def _layout_bytes(shape, itemsize):
    """Approximate VMEM footprint of a buffer: (8,128) padding on last two dims."""
    s = list(shape)
    s[-1] = _round_up(s[-1], 128)
    if len(s) >= 2:
        s[-2] = _round_up(s[-2], 8)
    n = itemsize
    for d in s:
        n *= d
    return n


def conv2d_nhwc_pallas(x, w_packed, b_packed, kernel_size, stride, padding, dilation):
    """Fused-im2col 2D convolution (groups=1, zero padding).

    x:        (N, H, W, C) NHWC activations (C may already carry zero-padded channels).
    w_packed: (KH, KW, C, COp) weight with COp a multiple of 128 (zero-padded columns).
    b_packed: (1, COp) zero-padded bias.
    Returns (N, OH, OW, COp) NHWC; the padded output channels are zero.
    """
    N, H, W, C = x.shape
    KH, KW = kernel_size
    sh, sw = stride
    ph, pw = padding
    dh, dw = dilation
    COp = w_packed.shape[-1]
    OH = (H + 2 * ph - dh * (KH - 1) - 1) // sh + 1
    OW = (W + 2 * pw - dw * (KW - 1) - 1) // sw + 1

    # Zero-pad spatially (rounded up to a stride multiple) and rearrange
    # (N, Hp, Wp, C) -> (N, sh, sw, Hq, Wq, C).  This is a ~1x activation copy
    # in XLA (vs. the previous KH*KW-fold im2col materialization), and makes
    # every kernel tap a static, stride-free slice inside the kernel.
    Hp = _round_up(H + 2 * ph, sh)
    Wp = _round_up(W + 2 * pw, sw)
    Hq, Wq = Hp // sh, Wp // sw
    xp = jnp.pad(x, ((0, 0), (ph, Hp - H - ph), (pw, Wp - W - pw), (0, 0)))
    xr = xp.reshape(N, Hq, sh, Wq, sw, C).transpose(0, 2, 4, 1, 3, 5)
    # TODO(synk): fuse the spatial pad/rearrange into the kernel (masking +
    # manual halo DMA) and tile over output rows for images too big for VMEM.

    def kernel(x_ref, w_ref, b_ref, o_ref):
        # x_ref: (sh, sw, Hq, Wq, C)   w_ref: (KH, KW, C, COp)
        # b_ref: (1, COp)              o_ref: (OH, OW, COp)
        # Initialize the accumulator with the bias -> epilogue is cast + store.
        acc = jnp.broadcast_to(b_ref[...].astype(jnp.float32), (OH * OW, COp))
        # Load each stride-phase plane once; all tap slabs below are plain
        # static value slices (no strided loads, no gathers).
        planes = [[x_ref[r, s] for s in range(sw)] for r in range(sh)]
        for kh in range(KH):
            qh, rh = divmod(kh * dh, sh)
            for kw in range(KW):
                qw, rw = divmod(kw * dw, sw)
                slab = planes[rh][rw][qh:qh + OH, qw:qw + OW, :]   # (OH, OW, C)
                acc = acc + jnp.dot(slab.reshape(OH * OW, C), w_ref[kh, kw],
                                    preferred_element_type=jnp.float32)
        o_ref[...] = acc.reshape(OH, OW, COp).astype(o_ref.dtype)

    itemsize = x.dtype.itemsize
    vmem_needed = (2 * _layout_bytes((sh, sw, Hq, Wq, C), itemsize)     # input blk (dbl buf)
                   + 2 * _layout_bytes((KH, KW, C, COp), itemsize)      # resident weight
                   + 2 * _layout_bytes((1, COp), itemsize)              # resident bias
                   + 2 * _layout_bytes((OH, OW, COp), itemsize))        # output blk (dbl buf)
    vmem_limit = min(96 * 1024 * 1024, max(16 * 1024 * 1024, int(vmem_needed * 1.5)))

    cost = pl.CostEstimate(
        flops=2 * N * OH * OW * KH * KW * C * COp,
        transcendentals=0,
        bytes_accessed=itemsize * (N * sh * sw * Hq * Wq * C       # input read once
                                   + KH * KW * C * COp + COp       # weight + bias once
                                   + N * OH * OW * COp))           # output written once

    return pl.pallas_call(
        kernel,
        out_shape=jax.ShapeDtypeStruct((N, OH, OW, COp), x.dtype),
        grid=(N,),
        in_specs=[
            pl.BlockSpec((None, sh, sw, Hq, Wq, C),
                         lambda n: (n, 0, 0, 0, 0, 0)),
            pl.BlockSpec((KH, KW, C, COp), lambda n: (0, 0, 0, 0)),   # VMEM-resident
            pl.BlockSpec((1, COp), lambda n: (0, 0)),                 # VMEM-resident
        ],
        out_specs=pl.BlockSpec((None, OH, OW, COp), lambda n: (n, 0, 0, 0)),
        compiler_params=pltpu.CompilerParams(
            dimension_semantics=("parallel",),
            vmem_limit_bytes=vmem_limit),
        cost_estimate=cost,
    )(xr, w_packed, b_packed)


class Conv2dPallas:
    """Mirror of the PyTorch Conv2d test module (chain of convs, groups=1)."""

    def __init__(self, key, height=16, width=16, nbr_conv=1,
                 in_channels=(4,), out_channels=(8,),
                 kernel_size=((3, 3),), stride=((2, 2),), padding=((1, 1),),
                 dilation=((1, 1),), batches=2, dtype=jnp.float32):
        self.nbr_convs = nbr_conv
        self.kernel_size = kernel_size
        self.stride = stride
        self.padding = padding
        self.dilation = dilation
        self.out_channels = out_channels
        self.batches = batches
        self.raw_params = []      # torch layout (CO, CI, KH, KW), (CO,)  -- reference
        self.packed_params = []   # (KH, KW, C_carried, COp), (1, COp)    -- kernel
        carried_c = in_channels[0]            # channel width fed to layer i
        for i in range(nbr_conv):
            key, kw_key, kb_key = jax.random.split(key, 3)
            ci, co = in_channels[i], out_channels[i]
            kh, kw = kernel_size[i]
            assert ci <= carried_c, "chained conv channel mismatch"
            fan_in = ci * kh * kw
            bound = 1.0 / (fan_in ** 0.5)
            # deterministic init mimicking torch.nn.Conv2d's uniform(+-1/sqrt(fan_in))
            w = jax.random.uniform(kw_key, (co, ci, kh, kw),
                                   minval=-bound, maxval=bound, dtype=dtype)
            b = jax.random.uniform(kb_key, (co,),
                                   minval=-bound, maxval=bound, dtype=dtype)
            self.raw_params.append((w, b))
            # Pre-pack once, outside the per-call hot path:
            #   (CO,CI,KH,KW) -> (KH,KW,CI,CO), embedded into
            #   (KH, KW, carried_c, COp) with zero rows/cols so the padded
            #   channel axis can be carried through the whole chain.
            COp = _round_up(co, 128)
            w_hwio = jnp.transpose(w, (2, 3, 1, 0))
            w_p = jnp.zeros((kh, kw, carried_c, COp), dtype)
            w_p = w_p.at[:, :, :ci, :co].set(w_hwio)
            b_p = jnp.zeros((1, COp), dtype).at[0, :co].set(b)
            self.packed_params.append((w_p, b_p))
            carried_c = COp    # next layer consumes the padded channel axis as-is
        self.final_co = out_channels[nbr_conv - 1]

    def __call__(self, x):
        # NCHW -> NHWC once; the whole chain stays NHWC with lane-dense
        # (128-padded) channels.  Padded channels are sliced only at the end.
        x = jnp.transpose(x, (0, 2, 3, 1))
        for i in range(self.nbr_convs):
            w_p, b_p = self.packed_params[i]
            x = conv2d_nhwc_pallas(x, w_p, b_p, self.kernel_size[i],
                                   self.stride[i], self.padding[i],
                                   self.dilation[i])
        x = x[..., :self.final_co]
        return jnp.transpose(x, (0, 3, 1, 2))   # back to NCHW at the boundary


if __name__ == "__main__":
    key = jax.random.PRNGKey(0)
    k_x, k_params = jax.random.split(key)

    N, CIN, H, W = 2, 4, 16, 16
    COUT = 8

    model = Conv2dPallas(k_params, height=H, width=W, nbr_conv=1,
                         in_channels=(CIN,), out_channels=(COUT,), batches=N)
    x = jax.random.normal(k_x, (N, CIN, H, W), dtype=jnp.float32)

    fwd = jax.jit(model.__call__)
    y = jax.block_until_ready(fwd(x))

    # Reference: XLA convolution (same semantics as torch.nn.Conv2d), at
    # highest precision.
    w0, b0 = model.raw_params[0]
    ref = jax.lax.conv_general_dilated(
        x, w0, window_strides=(2, 2), padding=((1, 1), (1, 1)),
        rhs_dilation=(1, 1), dimension_numbers=("NCHW", "OIHW", "NCHW"),
        precision=jax.lax.Precision.HIGHEST,
    ) + b0.reshape(1, COUT, 1, 1)

    assert y.shape == (N, COUT, H // 2, W // 2), y.shape
    # Tolerance covers possible bf16-pass MXU rounding of f32 operands; real
    # indexing / packing bugs produce O(0.1 - 1) errors and are still caught.
    assert jnp.allclose(y, ref, atol=1e-2, rtol=1e-2), \
        float(jnp.max(jnp.abs(y - ref)))
    print("KERNEL_OK")
</pallas_src>

<mosaic_0001>
module attributes {stable_mosaic.version = 11 : i64} {
  func.func @kernel(%arg0: i32, %arg1: memref<1x2x2x9x9x4xf32, #tpu.memory_space<vmem>>, %arg2: memref<3x3x4x128xf32, #tpu.memory_space<vmem>>, %arg3: memref<1x128xf32, #tpu.memory_space<vmem>>, %arg4: memref<1x8x8x128xf32, #tpu.memory_space<vmem>>) attributes {dimension_semantics = [#tpu.dimension_semantics<parallel>], iteration_bounds = array<i64: 2>, scalar_prefetch = 0 : i64, scratch_operands = 0 : i64, tpu.core_type = #tpu.core_type<tc>, window_params = [{transform_indices = @transform_0, window_bounds = array<i64: 1, 2, 2, 9, 9, 4>}, {pipeline_mode = #tpu.pipeline_mode<synchronous>, transform_indices = @transform_1, window_bounds = array<i64: 3, 3, 4, 128>}, {pipeline_mode = #tpu.pipeline_mode<synchronous>, transform_indices = @transform_2, window_bounds = array<i64: 1, 128>}, {transform_indices = @transform_3, window_bounds = array<i64: 1, 8, 8, 128>}]} {
    %c0 = arith.constant 0 : index
    %c0_0 = arith.constant 0 : index
    %0 = vector.load %arg3[%c0, %c0_0] : memref<1x128xf32, #tpu.memory_space<vmem>>, vector<1x128xf32>
    %1 = vector.shape_cast %0 : vector<1x128xf32> to vector<1x128xf32>
    %2 = vector.broadcast %1 : vector<1x128xf32> to vector<64x128xf32>
    %c0_1 = arith.constant 0 : index
    %c0_2 = arith.constant 0 : index
    %c0_3 = arith.constant 0 : index
    %c0_4 = arith.constant 0 : index
    %c0_5 = arith.constant 0 : index
    %c0_6 = arith.constant 0 : index
    %3 = vector.load %arg1[%c0_1, %c0_2, %c0_3, %c0_4, %c0_5, %c0_6] : memref<1x2x2x9x9x4xf32, #tpu.memory_space<vmem>>, vector<1x1x1x9x9x4xf32>
    %4 = vector.shape_cast %3 : vector<1x1x1x9x9x4xf32> to vector<9x9x4xf32>
    %c0_7 = arith.constant 0 : index
    %c0_8 = arith.constant 0 : index
    %c1 = arith.constant 1 : index
    %c0_9 = arith.constant 0 : index
    %c0_10 = arith.constant 0 : index
    %c0_11 = arith.constant 0 : index
    %5 = vector.load %arg1[%c0_7, %c0_8, %c1, %c0_9, %c0_10, %c0_11] : memref<1x2x2x9x9x4xf32, #tpu.memory_space<vmem>>, vector<1x1x1x9x9x4xf32>
    %6 = vector.shape_cast %5 : vector<1x1x1x9x9x4xf32> to vector<9x9x4xf32>
    %c0_12 = arith.constant 0 : index
    %c1_13 = arith.constant 1 : index
    %c0_14 = arith.constant 0 : index
    %c0_15 = arith.constant 0 : index
    %c0_16 = arith.constant 0 : index
    %c0_17 = arith.constant 0 : index
    %7 = vector.load %arg1[%c0_12, %c1_13, %c0_14, %c0_15, %c0_16, %c0_17] : memref<1x2x2x9x9x4xf32, #tpu.memory_space<vmem>>, vector<1x1x1x9x9x4xf32>
    %8 = vector.shape_cast %7 : vector<1x1x1x9x9x4xf32> to vector<9x9x4xf32>
    %c0_18 = arith.constant 0 : index
    %c1_19 = arith.constant 1 : index
    %c1_20 = arith.constant 1 : index
    %c0_21 = arith.constant 0 : index
    %c0_22 = arith.constant 0 : index
    %c0_23 = arith.constant 0 : index
    %9 = vector.load %arg1[%c0_18, %c1_19, %c1_20, %c0_21, %c0_22, %c0_23] : memref<1x2x2x9x9x4xf32, #tpu.memory_space<vmem>>, vector<1x1x1x9x9x4xf32>
    %10 = vector.shape_cast %9 : vector<1x1x1x9x9x4xf32> to vector<9x9x4xf32>
    %11 = vector.extract_strided_slice %4 {offsets = [0, 0, 0], sizes = [8, 8, 4], strides = [1, 1, 1]} : vector<9x9x4xf32> to vector<8x8x4xf32>
    %12 = vector.shape_cast %11 : vector<8x8x4xf32> to vector<64x4xf32>
    %c0_24 = arith.constant 0 : index
    %c0_25 = arith.constant 0 : index
    %c0_26 = arith.constant 0 : index
    %c0_27 = arith.constant 0 : index
    %13 = vector.load %arg2[%c0_24, %c0_25, %c0_26, %c0_27] : memref<3x3x4x128xf32, #tpu.memory_space<vmem>>, vector<1x1x4x128xf32>
    %14 = vector.shape_cast %13 : vector<1x1x4x128xf32> to vector<4x128xf32>
    %cst = arith.constant dense<0.000000e+00> : vector<64x128xf32>
    %15 = tpu.matmul %12, %14, %cst {dimension_numbers = #tpu.dot_dimension_numbers<[1], [0], [0], [1], [0, 0, 1, 1], [], []>} : vector<64x4xf32>, vector<4x128xf32>, vector<64x128xf32> -> vector<64x128xf32>
    %16 = arith.addf %2, %15 : vector<64x128xf32>
    %17 = vector.extract_strided_slice %6 {offsets = [0, 0, 0], sizes = [8, 8, 4], strides = [1, 1, 1]} : vector<9x9x4xf32> to vector<8x8x4xf32>
    %18 = vector.shape_cast %17 : vector<8x8x4xf32> to vector<64x4xf32>
    %c0_28 = arith.constant 0 : index
    %c1_29 = arith.constant 1 : index
    %c0_30 = arith.constant 0 : index
    %c0_31 = arith.constant 0 : index
    %19 = vector.load %arg2[%c0_28, %c1_29, %c0_30, %c0_31] : memref<3x3x4x128xf32, #tpu.memory_space<vmem>>, vector<1x1x4x128xf32>
    %20 = vector.shape_cast %19 : vector<1x1x4x128xf32> to vector<4x128xf32>
    %cst_32 = arith.constant dense<0.000000e+00> : vector<64x128xf32>
    %21 = tpu.matmul %18, %20, %cst_32 {dimension_numbers = #tpu.dot_dimension_numbers<[1], [0], [0], [1], [0, 0, 1, 1], [], []>} : vector<64x4xf32>, vector<4x128xf32>, vector<64x128xf32> -> vector<64x128xf32>
    %22 = arith.addf %16, %21 : vector<64x128xf32>
    %23 = vector.extract_strided_slice %4 {offsets = [0, 1, 0], sizes = [8, 8, 4], strides = [1, 1, 1]} : vector<9x9x4xf32> to vector<8x8x4xf32>
    %24 = vector.shape_cast %23 : vector<8x8x4xf32> to vector<64x4xf32>
    %c0_33 = arith.constant 0 : index
    %c2 = arith.constant 2 : index
    %c0_34 = arith.constant 0 : index
    %c0_35 = arith.constant 0 : index
    %25 = vector.load %arg2[%c0_33, %c2, %c0_34, %c0_35] : memref<3x3x4x128xf32, #tpu.memory_space<vmem>>, vector<1x1x4x128xf32>
    %26 = vector.shape_cast %25 : vector<1x1x4x128xf32> to vector<4x128xf32>
    %cst_36 = arith.constant dense<0.000000e+00> : vector<64x128xf32>
    %27 = tpu.matmul %24, %26, %cst_36 {dimension_numbers = #tpu.dot_dimension_numbers<[1], [0], [0], [1], [0, 0, 1, 1], [], []>} : vector<64x4xf32>, vector<4x128xf32>, vector<64x128xf32> -> vector<64x128xf32>
    %28 = arith.addf %22, %27 : vector<64x128xf32>
    %29 = vector.extract_strided_slice %8 {offsets = [0, 0, 0], sizes = [8, 8, 4], strides = [1, 1, 1]} : vector<9x9x4xf32> to vector<8x8x4xf32>
    %30 = vector.shape_cast %29 : vector<8x8x4xf32> to vector<64x4xf32>
    %c1_37 = arith.constant 1 : index
    %c0_38 = arith.constant 0 : index
    %c0_39 = arith.constant 0 : index
    %c0_40 = arith.constant 0 : index
    %31 = vector.load %arg2[%c1_37, %c0_38, %c0_39, %c0_40] : memref<3x3x4x128xf32, #tpu.memory_space<vmem>>, vector<1x1x4x128xf32>
    %32 = vector.shape_cast %31 : vector<1x1x4x128xf32> to vector<4x128xf32>
    %cst_41 = arith.constant dense<0.000000e+00> : vector<64x128xf32>
    %33 = tpu.matmul %30, %32, %cst_41 {dimension_numbers = #tpu.dot_dimension_numbers<[1], [0], [0], [1], [0, 0, 1, 1], [], []>} : vector<64x4xf32>, vector<4x128xf32>, vector<64x128xf32> -> vector<64x128xf32>
    %34 = arith.addf %28, %33 : vector<64x128xf32>
    %35 = vector.extract_strided_slice %10 {offsets = [0, 0, 0], sizes = [8, 8, 4], strides = [1, 1, 1]} : vector<9x9x4xf32> to vector<8x8x4xf32>
    %36 = vector.shape_cast %35 : vector<8x8x4xf32> to vector<64x4xf32>
    %c1_42 = arith.constant 1 : index
    %c1_43 = arith.constant 1 : index
    %c0_44 = arith.constant 0 : index
    %c0_45 = arith.constant 0 : index
    %37 = vector.load %arg2[%c1_42, %c1_43, %c0_44, %c0_45] : memref<3x3x4x128xf32, #tpu.memory_space<vmem>>, vector<1x1x4x128xf32>
    %38 = vector.shape_cast %37 : vector<1x1x4x128xf32> to vector<4x128xf32>
    %cst_46 = arith.constant dense<0.000000e+00> : vector<64x128xf32>
    %39 = tpu.matmul %36, %38, %cst_46 {dimension_numbers = #tpu.dot_dimension_numbers<[1], [0], [0], [1], [0, 0, 1, 1], [], []>} : vector<64x4xf32>, vector<4x128xf32>, vector<64x128xf32> -> vector<64x128xf32>
    %40 = arith.addf %34, %39 : vector<64x128xf32>
    %41 = vector.extract_strided_slice %8 {offsets = [0, 1, 0], sizes = [8, 8, 4], strides = [1, 1, 1]} : vector<9x9x4xf32> to vector<8x8x4xf32>
    %42 = vector.shape_cast %41 : vector<8x8x4xf32> to vector<64x4xf32>
    %c1_47 = arith.constant 1 : index
    %c2_48 = arith.constant 2 : index
    %c0_49 = arith.constant 0 : index
    %c0_50 = arith.constant 0 : index
    %43 = vector.load %arg2[%c1_47, %c2_48, %c0_49, %c0_50] : memref<3x3x4x128xf32, #tpu.memory_space<vmem>>, vector<1x1x4x128xf32>
    %44 = vector.shape_cast %43 : vector<1x1x4x128xf32> to vector<4x128xf32>
    %cst_51 = arith.constant dense<0.000000e+00> : vector<64x128xf32>
    %45 = tpu.matmul %42, %44, %cst_51 {dimension_numbers = #tpu.dot_dimension_numbers<[1], [0], [0], [1], [0, 0, 1, 1], [], []>} : vector<64x4xf32>, vector<4x128xf32>, vector<64x128xf32> -> vector<64x128xf32>
    %46 = arith.addf %40, %45 : vector<64x128xf32>
    %47 = vector.extract_strided_slice %4 {offsets = [1, 0, 0], sizes = [8, 8, 4], strides = [1, 1, 1]} : vector<9x9x4xf32> to vector<8x8x4xf32>
    %48 = vector.shape_cast %47 : vector<8x8x4xf32> to vector<64x4xf32>
    %c2_52 = arith.constant 2 : index
    %c0_53 = arith.constant 0 : index
    %c0_54 = arith.constant 0 : index
    %c0_55 = arith.constant 0 : index
    %49 = vector.load %arg2[%c2_52, %c0_53, %c0_54, %c0_55] : memref<3x3x4x128xf32, #tpu.memory_space<vmem>>, vector<1x1x4x128xf32>
    %50 = vector.shape_cast %49 : vector<1x1x4x128xf32> to vector<4x128xf32>
    %cst_56 = arith.constant dense<0.000000e+00> : vector<64x128xf32>
    %51 = tpu.matmul %48, %50, %cst_56 {dimension_numbers = #tpu.dot_dimension_numbers<[1], [0], [0], [1], [0, 0, 1, 1], [], []>} : vector<64x4xf32>, vector<4x128xf32>, vector<64x128xf32> -> vector<64x128xf32>
    %52 = arith.addf %46, %51 : vector<64x128xf32>
    %53 = vector.extract_strided_slice %6 {offsets = [1, 0, 0], sizes = [8, 8, 4], strides = [1, 1, 1]} : vector<9x9x4xf32> to vector<8x8x4xf32>
    %54 = vector.shape_cast %53 : vector<8x8x4xf32> to vector<64x4xf32>
    %c2_57 = arith.constant 2 : index
    %c1_58 = arith.constant 1 : index
    %c0_59 = arith.constant 0 : index
    %c0_60 = arith.constant 0 : index
    %55 = vector.load %arg2[%c2_57, %c1_58, %c0_59, %c0_60] : memref<3x3x4x128xf32, #tpu.memory_space<vmem>>, vector<1x1x4x128xf32>
    %56 = vector.shape_cast %55 : vector<1x1x4x128xf32> to vector<4x128xf32>
    %cst_61 = arith.constant dense<0.000000e+00> : vector<64x128xf32>
    %57 = tpu.matmul %54, %56, %cst_61 {dimension_numbers = #tpu.dot_dimension_numbers<[1], [0], [0], [1], [0, 0, 1, 1], [], []>} : vector<64x4xf32>, vector<4x128xf32>, vector<64x128xf32> -> vector<64x128xf32>
    %58 = arith.addf %52, %57 : vector<64x128xf32>
    %59 = vector.extract_strided_slice %4 {offsets = [1, 1, 0], sizes = [8, 8, 4], strides = [1, 1, 1]} : vector<9x9x4xf32> to vector<8x8x4xf32>
    %60 = vector.shape_cast %59 : vector<8x8x4xf32> to vector<64x4xf32>
    %c2_62 = arith.constant 2 : index
    %c2_63 = arith.constant 2 : index
    %c0_64 = arith.constant 0 : index
    %c0_65 = arith.constant 0 : index
    %61 = vector.load %arg2[%c2_62, %c2_63, %c0_64, %c0_65] : memref<3x3x4x128xf32, #tpu.memory_space<vmem>>, vector<1x1x4x128xf32>
    %62 = vector.shape_cast %61 : vector<1x1x4x128xf32> to vector<4x128xf32>
    %cst_66 = arith.constant dense<0.000000e+00> : vector<64x128xf32>
    %63 = tpu.matmul %60, %62, %cst_66 {dimension_numbers = #tpu.dot_dimension_numbers<[1], [0], [0], [1], [0, 0, 1, 1], [], []>} : vector<64x4xf32>, vector<4x128xf32>, vector<64x128xf32> -> vector<64x128xf32>
    %64 = arith.addf %58, %63 : vector<64x128xf32>
    %65 = vector.shape_cast %64 : vector<64x128xf32> to vector<8x8x128xf32>
    %c0_67 = arith.constant 0 : index
    %c0_68 = arith.constant 0 : index
    %c0_69 = arith.constant 0 : index
    %c0_70 = arith.constant 0 : index
    %66 = vector.load %arg4[%c0_67, %c0_68, %c0_69, %c0_70] : memref<1x8x8x128xf32, #tpu.memory_space<vmem>>, vector<1x8x8x128xf32>
    %67 = vector.shape_cast %66 : vector<1x8x8x128xf32> to vector<8x8x128xf32>
    %68 = vector.shape_cast %65 : vector<8x8x128xf32> to vector<1x8x8x128xf32>
    tpu.vector_store %arg4[%c0_67, %c0_68, %c0_69, %c0_70], %68 {strides = array<i32>} : memref<1x8x8x128xf32, #tpu.memory_space<vmem>>, vector<1x8x8x128xf32>,
    return
  }
  func.func @transform_0(%arg0: i32) -> (i32, i32, i32, i32, i32, i32) {
    %c0_i32 = arith.constant 0 : i32
    %c0_i32_0 = arith.constant 0 : i32
    %c0_i32_1 = arith.constant 0 : i32
    %c0_i32_2 = arith.constant 0 : i32
    %c0_i32_3 = arith.constant 0 : i32
    %c0_i32_4 = arith.constant 0 : i32
    return %arg0, %c0_i32, %c0_i32_0, %c0_i32_1, %c0_i32_2, %c0_i32_3 : i32, i32, i32, i32, i32, i32
  }
  func.func @transform_1(%arg0: i32) -> (i32, i32, i32, i32) {
    %c0_i32 = arith.constant 0 : i32
    %c0_i32_0 = arith.constant 0 : i32
    %c0_i32_1 = arith.constant 0 : i32
    %c0_i32_2 = arith.constant 0 : i32
    %c0_i32_3 = arith.constant 0 : i32
    return %c0_i32, %c0_i32_0, %c0_i32_1, %c0_i32_2 : i32, i32, i32, i32
  }
  func.func @transform_2(%arg0: i32) -> (i32, i32) {
    %c0_i32 = arith.constant 0 : i32
    %c0_i32_0 = arith.constant 0 : i32
    %c0_i32_1 = arith.constant 0 : i32
    return %c0_i32, %c0_i32_0 : i32, i32
  }
  func.func @transform_3(%arg0: i32) -> (i32, i32, i32, i32) {
    %c0_i32 = arith.constant 0 : i32
    %c0_i32_0 = arith.constant 0 : i32
    %c0_i32_1 = arith.constant 0 : i32
    %c0_i32_2 = arith.constant 0 : i32
    return %arg0, %c0_i32, %c0_i32_0, %c0_i32_1 : i32, i32, i32, i32
  }
}

</mosaic_0001>

<llo_original>
// kernel: a_call__.1
$region0: #{a_call__.1}
  #allocation0 [shape = 'u32[]', space=smem, size = 0x4, offset = 0x4, fixed_abs, tag = 'smem constant byte address 0x4 - core index']
  #allocation1 [shape = 'u32[144,128]{1,0:T(1,128)}', space=vmem, size = 0x12000, scoped, tag = 'internal scratch']
  %s0 = inlined_call_operand.vmem [shape: f32[2,2,2,9,9,4], index: 0, kind: input, shape index: {}]
  %s1 = inlined_call_operand.vmem [shape: f32[3,3,4,128], index: 1, kind: input, shape index: {}]
  %s2 = inlined_call_operand.vmem [shape: f32[1,128], index: 2, kind: input, shape index: {}]
  %s3 = inlined_call_operand.vmem [shape: f32[2,8,8,128], index: 3, kind: output, shape index: {}]
  %s4 = sld [smem:[#allocation0]]
  $region45: #{a_call__.1} parent=0
    _
  %s6 = ssub.s32 1, %s4
  %s7 = scalar_select 0, %s6, %s4
  loop: start=0, step=1, limit=4
  $region2: #{a_call__.1} parent=0 // loop_pre_header
    _
  $region3: #{a_call__.1} parent=0 // loop_header
    %s9 = sphi 0, %s13
    %p10 = scmp.ge.s32.totalorder %s9, 4
    %s19 = sphi 0, %s21
    %s22 = sphi 0, %s19
    %s23 = sphi 0, %s22
    %s39 = sphi 0, %s23
    %s43 = sphi 0, %s43
    %s45 = sphi 0, %s43
    %s46 = sphi 0, %s45
    %s60 = sphi 0, %s46
    %s64 = sphi 0, %s64
    %s66 = sphi 0, %s64
    %s67 = sphi 0, %s66
    %s81 = sphi 0, %s67
    %s87 = sphi 0, %s89
    %s90 = sphi 0, %s87
    %s91 = sphi 0, %s90
    %s107 = sphi 0, %s91
  $region4: #{a_call__.1} parent=0 // loop_header_branch
    %12 = sbr.rel (%p10) target = $region8
  $region5: #{a_call__.1} parent=0 // loop_body
    %s14 = ssub.s32 %s9, 1
    %s15 = ssub.s32 %s9, 2
    %s16 = sadd.s32 %s9, 1
    %s17 = ssub.s32 %s9, %s16
    %p18 = scmp.eq.s32.totalorder %s17, 0
    %s20 = sadd.s32 %s19, 1
    %s21 = scalar_select %p18, %s19, %s20
    %p24 = pneg %p18
    %p25 = scmp.eq.s32.totalorder %s9, 1
    %p26 = por %p24, %p25
    %p27 = scmp.ne.s32.totalorder %s19, %s22
    %p28 = scmp.eq.s32.totalorder %s9, 0
    %p29 = por %p27, %p28
    %p30 = scmp.ne.s32.totalorder %s19, %s22
    %p31 = scmp.eq.s32.totalorder %s14, 1
    %p32 = por %p30, %p31
    %p33 = scmp.ne.s32.totalorder %s22, %s23
    %p34 = scmp.eq.s32.totalorder %s14, 0
    %p35 = por %p33, %p34
    %p36 = scmp.ne.s32.totalorder %s22, %s23
    %p37 = scmp.eq.s32.totalorder %s15, 1
    %p38 = por %p36, %p37
    %p40 = scmp.ne.s32.totalorder %s23, %s39
    %p41 = scmp.eq.s32.totalorder %s15, 0
    %p42 = por %p40, %p41
    %s44 = sadd.s32 %s43, 1
    %p47 = scmp.eq.s32.totalorder %s9, 1
    %p48 = scmp.ne.s32.totalorder %s43, %s45
    %p49 = scmp.eq.s32.totalorder %s9, 0
    %p50 = por %p48, %p49
    %p51 = scmp.ne.s32.totalorder %s43, %s45
    %p52 = scmp.eq.s32.totalorder %s14, 1
    %p53 = por %p51, %p52
    %p54 = scmp.ne.s32.totalorder %s45, %s46
    %p55 = scmp.eq.s32.totalorder %s14, 0
    %p56 = por %p54, %p55
    %p57 = scmp.ne.s32.totalorder %s45, %s46
    %p58 = scmp.eq.s32.totalorder %s15, 1
    %p59 = por %p57, %p58
    %p61 = scmp.ne.s32.totalorder %s46, %s60
    %p62 = scmp.eq.s32.totalorder %s15, 0
    %p63 = por %p61, %p62
    %s65 = sadd.s32 %s64, 1
    %p68 = scmp.eq.s32.totalorder %s9, 1
    %p69 = scmp.ne.s32.totalorder %s64, %s66
    %p70 = scmp.eq.s32.totalorder %s9, 0
    %p71 = por %p69, %p70
    %p72 = scmp.ne.s32.totalorder %s64, %s66
    %p73 = scmp.eq.s32.totalorder %s14, 1
    %p74 = por %p72, %p73
    %p75 = scmp.ne.s32.totalorder %s66, %s67
    %p76 = scmp.eq.s32.totalorder %s14, 0
    %p77 = por %p75, %p76
    %p78 = scmp.ne.s32.totalorder %s66, %s67
    %p79 = scmp.eq.s32.totalorder %s15, 1
    %p80 = por %p78, %p79
    %p82 = scmp.ne.s32.totalorder %s67, %s81
    %p83 = scmp.eq.s32.totalorder %s15, 0
    %p84 = por %p82, %p83
    %s85 = ssub.s32 %s9, %s16
    %p86 = scmp.eq.s32.totalorder %s85, 0
    %s88 = sadd.s32 %s87, 1
    %s89 = scalar_select %p86, %s87, %s88
    %p92 = pneg %p86
    %p93 = scmp.eq.s32.totalorder %s9, 1
    %p94 = por %p92, %p93
    %p95 = scmp.ne.s32.totalorder %s87, %s90
    %p96 = scmp.eq.s32.totalorder %s9, 0
    %p97 = por %p95, %p96
    %p98 = scmp.ne.s32.totalorder %s87, %s90
    %p99 = scmp.eq.s32.totalorder %s14, 1
    %p100 = por %p98, %p99
    %p101 = scmp.ne.s32.totalorder %s90, %s91
    %p102 = scmp.eq.s32.totalorder %s14, 0
    %p103 = por %p101, %p102
    %p104 = scmp.ne.s32.totalorder %s90, %s91
    %p105 = scmp.eq.s32.totalorder %s15, 1
    %p106 = por %p104, %p105
    %p108 = scmp.ne.s32.totalorder %s91, %s107
    %p109 = scmp.eq.s32.totalorder %s15, 0
    %p110 = por %p108, %p109
    %p111 = scmp.le.s32.totalorder 1, %s9
    %p112 = scmp.lt.s32.totalorder %s9, 3
    %p113 = pnand %p111, %p112
    %p114 = pneg %p113
    // Predicated region
    $region9: #{a_call__.1} parent=5 // pred_check
      _
    $region10: #{a_call__.1} parent=5 // pred_check_branch
      %116 = sbr.rel (%p113) target = $region12
    $region11: #{a_call__.1} parent=5 // pred_region
      %s117 = ssub.s32 %s9, 1
      // Predicated region
      $region13: #{a_call__.1} parent=11 // pred_check
        %p118 = pneg %p56
      $region14: #{a_call__.1} parent=11 // pred_check_branch
        %120 = sbr.rel (%p118) target = $region16
      $region15: #{a_call__.1} parent=11 // pred_region
        _
      $region16: #{a_call__.1} parent=11 // pred_fallthru
        _
      // Predicated region
      $region17: #{a_call__.1} parent=11 // pred_check
        %p121 = pneg %p77
      $region18: #{a_call__.1} parent=11 // pred_check_branch
        %123 = sbr.rel (%p121) target = $region20
      $region19: #{a_call__.1} parent=11 // pred_region
        _
      $region20: #{a_call__.1} parent=11 // pred_fallthru
        _
    $region12: #{a_call__.1} parent=5 // pred_fallthru
      _
    %p124 = scmp.lt.s32.totalorder %s9, 2
    // Predicated region
    $region21: #{a_call__.1} parent=5 // pred_check
      %p125 = pneg %p124
    $region22: #{a_call__.1} parent=5 // pred_check_branch
      %127 = sbr.rel (%p125) target = $region24
    $region23: #{a_call__.1} parent=5 // pred_region
      // Predicated region
      $region25: #{a_call__.1} parent=23 // pred_check
        %p128 = pneg %p29
      $region26: #{a_call__.1} parent=23 // pred_check_branch
        %130 = sbr.rel (%p128) target = $region28
      $region27: #{a_call__.1} parent=23 // pred_region
        %p131 = scmp.lt.s32.totalorder %s9, 1
        %s132 = scalar_select %p131, %s9, 1
        %s133 = smul.addr %s132, 72
        %s134 = smul.addr %s133, 8
        %s135 = scalar_lea.vmem %s0, %s134
      $region28: #{a_call__.1} parent=23 // pred_fallthru
        _
    $region24: #{a_call__.1} parent=5 // pred_fallthru
      _
    %p136 = scmp.le.s32.totalorder 1, %s9
    %p137 = scmp.lt.s32.totalorder %s9, 3
    %p138 = pnand %p136, %p137
    %p139 = pneg %p138
    // Predicated region
    $region29: #{a_call__.1} parent=5 // pred_check
      _
    $region30: #{a_call__.1} parent=5 // pred_check_branch
      %141 = sbr.rel (%p138) target = $region32
    $region31: #{a_call__.1} parent=5 // pred_region
      %s142 = ssub.s32 %s9, 1
      %p143 = scmp.lt.s32.totalorder %s14, 1
      %s144 = scalar_select %p143, %s14, 1
      %s145 = smul.addr %s144, 72
      %s146 = smul.addr %s145, 8
      %s147 = scalar_lea.vmem %s0, %s146
      %p148 = pneg %p35
      %p149 = pneg %p32
      %p150 = pneg %p56
      %p151 = pneg %p53
      %p152 = pneg %p77
      %p153 = pneg %p74
      %p154 = pneg %p103
      %p155 = pneg %p100
      %p156 = scmp.lt.s32.totalorder %s14, 1
      %s157 = scalar_select %p156, %s14, 1
      %s158 = smul.addr %s157, 8
      %s159 = smul.addr %s158, 8
      %s160 = scalar_lea.vmem %s3, %s159
      %p161 = scmp.lt.s32.totalorder %s14, 1
      %s162 = scalar_select %p161, %s14, 1
      %s163 = smul.addr %s162, 72
      %s164 = smul.addr %s163, 8
      %s165 = scalar_lea.vmem %s0, %s164
      %p166 = scmp.lt.s32.totalorder %s14, 1
      %s167 = scalar_select %p166, %s14, 1
      %s168 = smul.addr %s167, 8
      %s169 = smul.addr %s168, 8
      %s170 = scalar_lea.vmem %s3, %s169
      %v171 = vld [vmem:[%s2] sm:$0x1]
      %v173 = vlaneseq
      %v174 = vshrl.u32 %v173, 7
      %v175 = vsub.s32 0, %v174
      %v176 = vrot.slane %v171, %v175
      %v178 = vld [vmem:[%s165] sm:$0xff]
      %v179 = vld [vmem:[%s165 + $0x8] sm:$0x1]
      %v180 = vld [vmem:[%s165 + $0x10] sm:$0xff]
      %v181 = vld [vmem:[%s165 + $0x18] sm:$0x1]
      %v182 = vld [vmem:[%s165 + $0x20] sm:$0xff]
      %v183 = vld [vmem:[%s165 + $0x28] sm:$0x1]
      %v184 = vld [vmem:[%s165 + $0x30] sm:$0xff]
      %v185 = vld [vmem:[%s165 + $0x38] sm:$0x1]
      %v186 = vld [vmem:[%s165 + $0x40] sm:$0xff]
      %v187 = vld [vmem:[%s165 + $0x48] sm:$0x1]
      %v188 = vld [vmem:[%s165 + $0x50] sm:$0xff]
      %v189 = vld [vmem:[%s165 + $0x58] sm:$0x1]
      %v190 = vld [vmem:[%s165 + $0x60] sm:$0xff]
      %v191 = vld [vmem:[%s165 + $0x68] sm:$0x1]
      %v192 = vld [vmem:[%s165 + $0x70] sm:$0xff]
      %v193 = vld [vmem:[%s165 + $0x78] sm:$0x1]
      %v194 = vld [vmem:[%s165 + $0x80] sm:$0xff]
      %v195 = vld [vmem:[%s165 + $0x88] sm:$0x1]
      %s196 = scalar_lea.vmem %s165, 144
      %v197 = vld [vmem:[%s196] sm:$0xff]
      %v198 = vld [vmem:[%s196 + $0x10] sm:$0xff]
      %v199 = vld [vmem:[%s196 + $0x20] sm:$0xff]
      %v200 = vld [vmem:[%s196 + $0x30] sm:$0xff]
      %v201 = vld [vmem:[%s196 + $0x40] sm:$0xff]
      %v202 = vld [vmem:[%s196 + $0x50] sm:$0xff]
      %v203 = vld [vmem:[%s196 + $0x60] sm:$0xff]
      %v204 = vld [vmem:[%s196 + $0x70] sm:$0xff]
      %v205 = vld [vmem:[%s196 + $0x80] sm:$0xff]
      %s206 = scalar_lea.vmem %s165, 288
      %v207 = vld [vmem:[%s206] sm:$0xff]
      %v208 = vld [vmem:[%s206 + $0x8] sm:$0x1]
      %v209 = vld [vmem:[%s206 + $0x10] sm:$0xff]
      %v210 = vld [vmem:[%s206 + $0x18] sm:$0x1]
      %v211 = vld [vmem:[%s206 + $0x20] sm:$0xff]
      %v212 = vld [vmem:[%s206 + $0x28] sm:$0x1]
      %v213 = vld [vmem:[%s206 + $0x30] sm:$0xff]
      %v214 = vld [vmem:[%s206 + $0x38] sm:$0x1]
      %v215 = vld [vmem:[%s206 + $0x40] sm:$0xff]
      %v216 = vld [vmem:[%s206 + $0x48] sm:$0x1]
      %v217 = vld [vmem:[%s206 + $0x50] sm:$0xff]
      %v218 = vld [vmem:[%s206 + $0x58] sm:$0x1]
      %v219 = vld [vmem:[%s206 + $0x60] sm:$0xff]
      %v220 = vld [vmem:[%s206 + $0x68] sm:$0x1]
      %v221 = vld [vmem:[%s206 + $0x70] sm:$0xff]
      %v222 = vld [vmem:[%s206 + $0x78] sm:$0x1]
      %s223 = scalar_lea.vmem %s165, 432
      %v224 = vld [vmem:[%s223] sm:$0xff]
      %v225 = vld [vmem:[%s223 + $0x10] sm:$0xff]
      %v226 = vld [vmem:[%s223 + $0x20] sm:$0xff]
      %v227 = vld [vmem:[%s223 + $0x30] sm:$0xff]
      %v228 = vld [vmem:[%s223 + $0x40] sm:$0xff]
      %v229 = vld [vmem:[%s223 + $0x50] sm:$0xff]
      %v230 = vld [vmem:[%s223 + $0x60] sm:$0xff]
      %v231 = vld [vmem:[%s223 + $0x70] sm:$0xff]
      %v232 = vld [vmem:[%s1] sm:$0xf]
      %vm233 = vcmask 31744
      %v235 = vsel %vm233, %v178, 0
      %v238 = vsel %vm233, %v180, 0
      %v241 = vsel %vm233, %v182, 0
      %v244 = vsel %vm233, %v184, 0
      %v247 = vsel %vm233, %v186, 0
      %v250 = vsel %vm233, %v188, 0
      %v253 = vsel %vm233, %v190, 0
      %v256 = vsel %vm233, %v192, 0
      %vm258 = vcmask 1043456
      %v260 = vsel %vm258, %v232, 0
      %262 = vmatprep.subr.mxu0 0.0
      %263 = vmatpush1.msra.mxu0 %v260
      %264 = vmatprep.subr.mxu0 0.0
      %265 = vmatpush1.msra.mxu0 0.0
      %266 = vmatprep.subr.mxu0 0.0
      %267 = vmatpush1.msra.mxu0 0.0
      %268 = vmatprep.subr.mxu0 0.0
      %269 = vmatpush1.msra.mxu0 0.0
      %270 = vmatprep.subr.mxu0 0.0
      %271 = vmatpush1.msra.mxu0 0.0
      %272 = vmatprep.subr.mxu0 0.0
      %273 = vmatpush1.msra.mxu0 0.0
      %274 = vmatprep.subr.mxu0 0.0
      %275 = vmatpush1.msra.mxu0 0.0
      %276 = vmatprep.subr.mxu0 0.0
      %277 = vmatpush1.msra.mxu0 0.0
      %278 = vmatprep.subr.mxu0 0.0
      %279 = vmatpush1.msra.mxu0 0.0
      %280 = vmatprep.subr.mxu0 0.0
      %281 = vmatpush1.msra.mxu0 0.0
      %282 = vmatprep.subr.mxu0 0.0
      %283 = vmatpush1.msra.mxu0 0.0
      %284 = vmatprep.subr.mxu0 0.0
      %285 = vmatpush1.msra.mxu0 0.0
      %286 = vmatprep.subr.mxu0 0.0
      %287 = vmatpush1.msra.mxu0 0.0
      %288 = vmatprep.subr.mxu0 0.0
      %289 = vmatpush1.msra.mxu0 0.0
      %290 = vmatprep.subr.mxu0 0.0
      %291 = vmatpush1.msra.mxu0 0.0
      %292 = vmatprep.subr.mxu0 0.0
      %293 = vmatpush1.msra.mxu0 0.0
      %294 = vmatprep.subr.mxu0 0.0
      %295 = vmatpush1.msra.mxu0 0.0
      %296 = vmatprep.subr.mxu0 0.0
      %297 = vmatpush1.msra.mxu0 0.0
      %298 = vmatprep.subr.mxu0 0.0
      %299 = vmatpush1.msra.mxu0 0.0
      %300 = vmatprep.subr.mxu0 0.0
      %301 = vmatpush1.msra.mxu0 0.0
      %302 = vmatprep.subr.mxu0 0.0
      %303 = vmatpush1.msra.mxu0 0.0
      %304 = vmatprep.subr.mxu0 0.0
      %305 = vmatpush1.msra.mxu0 0.0
      %306 = vmatprep.subr.mxu0 0.0
      %307 = vmatpush1.msra.mxu0 0.0
      %308 = vmatprep.subr.mxu0 0.0
      %309 = vmatpush1.msra.mxu0 0.0
      %310 = vmatprep.subr.mxu0 0.0
      %311 = vmatpush1.msra.mxu0 0.0
      %312 = vmatprep.subr.mxu0 0.0
      %313 = vmatpush1.msra.mxu0 0.0
      %314 = vmatprep.subr.mxu0 0.0
      %315 = vmatpush1.msra.mxu0 0.0
      %316 = vmatprep.subr.mxu0 0.0
      %317 = vmatpush1.msra.mxu0 0.0
      %318 = vmatprep.subr.mxu0 0.0
      %319 = vmatpush1.msra.mxu0 0.0
      %320 = vmatprep.subr.mxu0 0.0
      %321 = vmatpush1.msra.mxu0 0.0
      %322 = vmatprep.subr.mxu0 0.0
      %323 = vmatpush1.msra.mxu0 0.0
      %324 = vmatprep.subr.mxu0 0.0
      %325 = vmatpush1.msra.mxu0 0.0
      %326 = vmatprep.mubr.f32.mxu0 0.0
      %327 = vmatmul.mubr.f32.gmra.mrb[0].mxu0 %v235
      %v328 = vpop.f32.mrb[0].mxu0
      %v329 = vadd.f32 0.0, %v328
      %v330 = vpop.f32.mrb[0].mxu0
      %331 = vmatprep.mubr.f32.mxu0 0.0
      %332 = vmatmul.mubr.f32.gmra.mrb[0].mxu0 %v238
      %v333 = vpop.f32.mrb[0].mxu0
      %v334 = vadd.f32 0.0, %v333
      %v335 = vpop.f32.mrb[0].mxu0
      %336 = vmatprep.mubr.f32.mxu0 0.0
      %337 = vmatmul.mubr.f32.gmra.mrb[0].mxu0 %v241
      %v338 = vpop.f32.mrb[0].mxu0
      %v339 = vadd.f32 0.0, %v338
      %v340 = vpop.f32.mrb[0].mxu0
      %341 = vmatprep.mubr.f32.mxu0 0.0
      %342 = vmatmul.mubr.f32.gmra.mrb[0].mxu0 %v244
      %v343 = vpop.f32.mrb[0].mxu0
      %v344 = vadd.f32 0.0, %v343
      %v345 = vpop.f32.mrb[0].mxu0
      %346 = vmatprep.mubr.f32.mxu0 0.0
      %347 = vmatmul.mubr.f32.gmra.mrb[0].mxu0 %v247
      %v348 = vpop.f32.mrb[0].mxu0
      %v349 = vadd.f32 0.0, %v348
      %v350 = vpop.f32.mrb[0].mxu0
      %351 = vmatprep.mubr.f32.mxu0 0.0
      %352 = vmatmul.mubr.f32.gmra.mrb[0].mxu0 %v250
      %v353 = vpop.f32.mrb[0].mxu0
      %v354 = vadd.f32 0.0, %v353
      %v355 = vpop.f32.mrb[0].mxu0
      %356 = vmatprep.mubr.f32.mxu0 0.0
      %357 = vmatmul.mubr.f32.gmra.mrb[0].mxu0 %v253
      %v358 = vpop.f32.mrb[0].mxu0
      %v359 = vadd.f32 0.0, %v358
      %v360 = vpop.f32.mrb[0].mxu0
      %361 = vmatprep.mubr.f32.mxu0 0.0
      %362 = vmatmul.mubr.f32.gmra.mrb[0].mxu0 %v256
      %v363 = vpop.f32.mrb[0].mxu0
      %v364 = vadd.f32 0.0, %v363
      %v365 = vpop.f32.mrb[0].mxu0
      %366 = vdwg.mxu0
      %v367 = vadd.f32 %v176, %v329
      %v368 = vadd.f32 %v176, %v334
      %v369 = vadd.f32 %v176, %v339
      %v370 = vadd.f32 %v176, %v344
      %v371 = vadd.f32 %v176, %v349
      %v372 = vadd.f32 %v176, %v354
      %v373 = vadd.f32 %v176, %v359
      %v374 = vadd.f32 %v176, %v364
      %s375 = scalar_lea.vmem %s1, 4
      %v376 = vld [vmem:[%s375] sm:$0xf]
      %v378 = vsel %vm233, %v197, 0
      %v381 = vsel %vm233, %v198, 0
      %v384 = vsel %vm233, %v199, 0
      %v387 = vsel %vm233, %v200, 0
      %v390 = vsel %vm233, %v201, 0
      %v393 = vsel %vm233, %v202, 0
      %v396 = vsel %vm233, %v203, 0
      %v399 = vsel %vm233, %v204, 0
      %v402 = vsel %vm258, %v376, 0
      %404 = vmatprep.subr.mxu0 0.0
      %405 = vmatpush1.msra.mxu0 %v402
      %406 = vmatprep.subr.mxu0 0.0
      %407 = vmatpush1.msra.mxu0 0.0
      %408 = vmatprep.subr.mxu0 0.0
      %409 = vmatpush1.msra.mxu0 0.0
      %410 = vmatprep.subr.mxu0 0.0
      %411 = vmatpush1.msra.mxu0 0.0
      %412 = vmatprep.subr.mxu0 0.0
      %413 = vmatpush1.msra.mxu0 0.0
      %414 = vmatprep.subr.mxu0 0.0
      %415 = vmatpush1.msra.mxu0 0.0
      %416 = vmatprep.subr.mxu0 0.0
      %417 = vmatpush1.msra.mxu0 0.0
      %418 = vmatprep.subr.mxu0 0.0
      %419 = vmatpush1.msra.mxu0 0.0
      %420 = vmatprep.subr.mxu0 0.0
      %421 = vmatpush1.msra.mxu0 0.0
      %422 = vmatprep.subr.mxu0 0.0
      %423 = vmatpush1.msra.mxu0 0.0
      %424 = vmatprep.subr.mxu0 0.0
      %425 = vmatpush1.msra.mxu0 0.0
      %426 = vmatprep.subr.mxu0 0.0
      %427 = vmatpush1.msra.mxu0 0.0
      %428 = vmatprep.subr.mxu0 0.0
      %429 = vmatpush1.msra.mxu0 0.0
      %430 = vmatprep.subr.mxu0 0.0
      %431 = vmatpush1.msra.mxu0 0.0
      %432 = vmatprep.subr.mxu0 0.0
      %433 = vmatpush1.msra.mxu0 0.0
      %434 = vmatprep.subr.mxu0 0.0
      %435 = vmatpush1.msra.mxu0 0.0
      %436 = vmatprep.subr.mxu0 0.0
      %437 = vmatpush1.msra.mxu0 0.0
      %438 = vmatprep.subr.mxu0 0.0
      %439 = vmatpush1.msra.mxu0 0.0
      %440 = vmatprep.subr.mxu0 0.0
      %441 = vmatpush1.msra.mxu0 0.0
      %442 = vmatprep.subr.mxu0 0.0
      %443 = vmatpush1.msra.mxu0 0.0
      %444 = vmatprep.subr.mxu0 0.0
      %445 = vmatpush1.msra.mxu0 0.0
      %446 = vmatprep.subr.mxu0 0.0
      %447 = vmatpush1.msra.mxu0 0.0
      %448 = vmatprep.subr.mxu0 0.0
      %449 = vmatpush1.msra.mxu0 0.0
      %450 = vmatprep.subr.mxu0 0.0
      %451 = vmatpush1.msra.mxu0 0.0
      %452 = vmatprep.subr.mxu0 0.0
      %453 = vmatpush1.msra.mxu0 0.0
      %454 = vmatprep.subr.mxu0 0.0
      %455 = vmatpush1.msra.mxu0 0.0
      %456 = vmatprep.subr.mxu0 0.0
      %457 = vmatpush1.msra.mxu0 0.0
      %458 = vmatprep.subr.mxu0 0.0
      %459 = vmatpush1.msra.mxu0 0.0
      %460 = vmatprep.subr.mxu0 0.0
      %461 = vmatpush1.msra.mxu0 0.0
      %462 = vmatprep.subr.mxu0 0.0
      %463 = vmatpush1.msra.mxu0 0.0
      %464 = vmatprep.subr.mxu0 0.0
      %465 = vmatpush1.msra.mxu0 0.0
      %466 = vmatprep.subr.mxu0 0.0
      %467 = vmatpush1.msra.mxu0 0.0
      %468 = vmatprep.mubr.f32.mxu0 0.0
      %469 = vmatmul.mubr.f32.gmra.mrb[0].mxu0 %v378
      %v470 = vpop.f32.mrb[0].mxu0
      %v471 = vadd.f32 0.0, %v470
      %v472 = vpop.f32.mrb[0].mxu0
      %473 = vmatprep.mubr.f32.mxu0 0.0
      %474 = vmatmul.mubr.f32.gmra.mrb[0].mxu0 %v381
      %v475 = vpop.f32.mrb[0].mxu0
      %v476 = vadd.f32 0.0, %v475
      %v477 = vpop.f32.mrb[0].mxu0
      %478 = vmatprep.mubr.f32.mxu0 0.0
      %479 = vmatmul.mubr.f32.gmra.mrb[0].mxu0 %v384
      %v480 = vpop.f32.mrb[0].mxu0
      %v481 = vadd.f32 0.0, %v480
      %v482 = vpop.f32.mrb[0].mxu0
      %483 = vmatprep.mubr.f32.mxu0 0.0
      %484 = vmatmul.mubr.f32.gmra.mrb[0].mxu0 %v387
      %v485 = vpop.f32.mrb[0].mxu0
      %v486 = vadd.f32 0.0, %v485
      %v487 = vpop.f32.mrb[0].mxu0
      %488 = vmatprep.mubr.f32.mxu0 0.0
      %489 = vmatmul.mubr.f32.gmra.mrb[0].mxu0 %v390
      %v490 = vpop.f32.mrb[0].mxu0
      %v491 = vadd.f32 0.0, %v490
      %v492 = vpop.f32.mrb[0].mxu0
      %493 = vmatprep.mubr.f32.mxu0 0.0
      %494 = vmatmul.mubr.f32.gmra.mrb[0].mxu0 %v393
      %v495 = vpop.f32.mrb[0].mxu0
      %v496 = vadd.f32 0.0, %v495
      %v497 = vpop.f32.mrb[0].mxu0
      %498 = vmatprep.mubr.f32.mxu0 0.0
      %499 = vmatmul.mubr.f32.gmra.mrb[0].mxu0 %v396
      %v500 = vpop.f32.mrb[0].mxu0
      %v501 = vadd.f32 0.0, %v500
      %v502 = vpop.f32.mrb[0].mxu0
      %503 = vmatprep.mubr.f32.mxu0 0.0
      %504 = vmatmul.mubr.f32.gmra.mrb[0].mxu0 %v399
      %v505 = vpop.f32.mrb[0].mxu0
      %v506 = vadd.f32 0.0, %v505
      %v507 = vpop.f32.mrb[0].mxu0
      %508 = vdwg.mxu0
      %v509 = vadd.f32 %v367, %v471
      %v510 = vadd.f32 %v368, %v476
      %v511 = vadd.f32 %v369, %v481
      %v512 = vadd.f32 %v370, %v486
      %v513 = vadd.f32 %v371, %v491
      %v514 = vadd.f32 %v372, %v496
      %v515 = vadd.f32 %v373, %v501
      %v516 = vadd.f32 %v374, %v506
      %vm525 = vcmask 1046528
      %v526 = vrot.slane %v178, 1
      %v527 = vrot.slane %v179, 1
      %v528 = vsel %vm525, %v526, %v527
      %v529 = vrot.slane %v180, 1
      %v530 = vrot.slane %v181, 1
      %v531 = vsel %vm525, %v529, %v530
      %v532 = vrot.slane %v182, 1
      %v533 = vrot.slane %v183, 1
      %v534 = vsel %vm525, %v532, %v533
      %v535 = vrot.slane %v184, 1
      %v536 = vrot.slane %v185, 1
      %v537 = vsel %vm525, %v535, %v536
      %v538 = vrot.slane %v186, 1
      %v539 = vrot.slane %v187, 1
      %v540 = vsel %vm525, %v538, %v539
      %v541 = vrot.slane %v188, 1
      %v542 = vrot.slane %v189, 1
      %v543 = vsel %vm525, %v541, %v542
      %v544 = vrot.slane %v190, 1
      %v545 = vrot.slane %v191, 1
      %v546 = vsel %vm525, %v544, %v545
      %v547 = vrot.slane %v192, 1
      %v548 = vrot.slane %v193, 1
      %v549 = vsel %vm525, %v547, %v548
      %s550 = scalar_lea.vmem %s1, 8
      %v551 = vld [vmem:[%s550] sm:$0xf]
      %v552 = vsel %vm233, %v528, 0
      %v554 = vsel %vm233, %v531, 0
      %v556 = vsel %vm233, %v534, 0
      %v558 = vsel %vm233, %v537, 0
      %v560 = vsel %vm233, %v540, 0
      %v562 = vsel %vm233, %v543, 0
      %v564 = vsel %vm233, %v546, 0
      %v566 = vsel %vm233, %v549, 0
      %v569 = vsel %vm258, %v551, 0
      %571 = vmatprep.subr.mxu0 0.0
      %572 = vmatpush1.msra.mxu0 %v569
      %573 = vmatprep.subr.mxu0 0.0
      %574 = vmatpush1.msra.mxu0 0.0
      %575 = vmatprep.subr.mxu0 0.0
      %576 = vmatpush1.msra.mxu0 0.0
      %577 = vmatprep.subr.mxu0 0.0
      %578 = vmatpush1.msra.mxu0 0.0
      %579 = vmatprep.subr.mxu0 0.0
      %580 = vmatpush1.msra.mxu0 0.0
      %581 = vmatprep.subr.mxu0 0.0
      %582 = vmatpush1.msra.mxu0 0.0
      %583 = vmatprep.subr.mxu0 0.0
      %584 = vmatpush1.msra.mxu0 0.0
      %585 = vmatprep.subr.mxu0 0.0
      %586 = vmatpush1.msra.mxu0 0.0
      %587 = vmatprep.subr.mxu0 0.0
      %588 = vmatpush1.msra.mxu0 0.0
      %589 = vmatprep.subr.mxu0 0.0
      %590 = vmatpush1.msra.mxu0 0.0
      %591 = vmatprep.subr.mxu0 0.0
      %592 = vmatpush1.msra.mxu0 0.0
      %593 = vmatprep.subr.mxu0 0.0
      %594 = vmatpush1.msra.mxu0 0.0
      %595 = vmatprep.subr.mxu0 0.0
      %596 = vmatpush1.msra.mxu0 0.0
      %597 = vmatprep.subr.mxu0 0.0
      %598 = vmatpush1.msra.mxu0 0.0
      %599 = vmatprep.subr.mxu0 0.0
      %600 = vmatpush1.msra.mxu0 0.0
      %601 = vmatprep.subr.mxu0 0.0
      %602 = vmatpush1.msra.mxu0 0.0
      %603 = vmatprep.subr.mxu0 0.0
      %604 = vmatpush1.msra.mxu0 0.0
      %605 = vmatprep.subr.mxu0 0.0
      %606 = vmatpush1.msra.mxu0 0.0
      %607 = vmatprep.subr.mxu0 0.0
      %608 = vmatpush1.msra.mxu0 0.0
      %609 = vmatprep.subr.mxu0 0.0
      %610 = vmatpush1.msra.mxu0 0.0
      %611 = vmatprep.subr.mxu0 0.0
      %612 = vmatpush1.msra.mxu0 0.0
      %613 = vmatprep.subr.mxu0 0.0
      %614 = vmatpush1.msra.mxu0 0.0
      %615 = vmatprep.subr.mxu0 0.0
      %616 = vmatpush1.msra.mxu0 0.0
      %617 = vmatprep.subr.mxu0 0.0
      %618 = vmatpush1.msra.mxu0 0.0
      %619 = vmatprep.subr.mxu0 0.0
      %620 = vmatpush1.msra.mxu0 0.0
      %621 = vmatprep.subr.mxu0 0.0
      %622 = vmatpush1.msra.mxu0 0.0
      %623 = vmatprep.subr.mxu0 0.0
      %624 = vmatpush1.msra.mxu0 0.0
      %625 = vmatprep.subr.mxu0 0.0
      %626 = vmatpush1.msra.mxu0 0.0
      %627 = vmatprep.subr.mxu0 0.0
      %628 = vmatpush1.msra.mxu0 0.0
      %629 = vmatprep.subr.mxu0 0.0
      %630 = vmatpush1.msra.mxu0 0.0
      %631 = vmatprep.subr.mxu0 0.0
      %632 = vmatpush1.msra.mxu0 0.0
      %633 = vmatprep.subr.mxu0 0.0
      %634 = vmatpush1.msra.mxu0 0.0
      %635 = vmatprep.mubr.f32.mxu0 0.0
      %636 = vmatmul.mubr.f32.gmra.mrb[0].mxu0 %v552
      %v637 = vpop.f32.mrb[0].mxu0
      %v638 = vadd.f32 0.0, %v637
      %v639 = vpop.f32.mrb[0].mxu0
      %640 = vmatprep.mubr.f32.mxu0 0.0
      %641 = vmatmul.mubr.f32.gmra.mrb[0].mxu0 %v554
      %v642 = vpop.f32.mrb[0].mxu0
      %v643 = vadd.f32 0.0, %v642
      %v644 = vpop.f32.mrb[0].mxu0
      %645 = vmatprep.mubr.f32.mxu0 0.0
      %646 = vmatmul.mubr.f32.gmra.mrb[0].mxu0 %v556
      %v647 = vpop.f32.mrb[0].mxu0
      %v648 = vadd.f32 0.0, %v647
      %v649 = vpop.f32.mrb[0].mxu0
      %650 = vmatprep.mubr.f32.mxu0 0.0
      %651 = vmatmul.mubr.f32.gmra.mrb[0].mxu0 %v558
      %v652 = vpop.f32.mrb[0].mxu0
      %v653 = vadd.f32 0.0, %v652
      %v654 = vpop.f32.mrb[0].mxu0
      %655 = vmatprep.mubr.f32.mxu0 0.0
      %656 = vmatmul.mubr.f32.gmra.mrb[0].mxu0 %v560
      %v657 = vpop.f32.mrb[0].mxu0
      %v658 = vadd.f32 0.0, %v657
      %v659 = vpop.f32.mrb[0].mxu0
      %660 = vmatprep.mubr.f32.mxu0 0.0
      %661 = vmatmul.mubr.f32.gmra.mrb[0].mxu0 %v562
      %v662 = vpop.f32.mrb[0].mxu0
      %v663 = vadd.f32 0.0, %v662
      %v664 = vpop.f32.mrb[0].mxu0
      %665 = vmatprep.mubr.f32.mxu0 0.0
      %666 = vmatmul.mubr.f32.gmra.mrb[0].mxu0 %v564
      %v667 = vpop.f32.mrb[0].mxu0
      %v668 = vadd.f32 0.0, %v667
      %v669 = vpop.f32.mrb[0].mxu0
      %670 = vmatprep.mubr.f32.mxu0 0.0
      %671 = vmatmul.mubr.f32.gmra.mrb[0].mxu0 %v566
      %v672 = vpop.f32.mrb[0].mxu0
      %v673 = vadd.f32 0.0, %v672
      %v674 = vpop.f32.mrb[0].mxu0
      %675 = vdwg.mxu0
      %v676 = vadd.f32 %v509, %v638
      %v677 = vadd.f32 %v510, %v643
      %v678 = vadd.f32 %v511, %v648
      %v679 = vadd.f32 %v512, %v653
      %v680 = vadd.f32 %v513, %v658
      %v681 = vadd.f32 %v514, %v663
      %v682 = vadd.f32 %v515, %v668
      %v683 = vadd.f32 %v516, %v673
      %s684 = scalar_lea.vmem %s1, 12
      %v685 = vld [vmem:[%s684] sm:$0xf]
      %v687 = vsel %vm233, %v207, 0
      %v690 = vsel %vm233, %v209, 0
      %v693 = vsel %vm233, %v211, 0
      %v696 = vsel %vm233, %v213, 0
      %v699 = vsel %vm233, %v215, 0
      %v702 = vsel %vm233, %v217, 0
      %v705 = vsel %vm233, %v219, 0
      %v708 = vsel %vm233, %v221, 0
      %v711 = vsel %vm258, %v685, 0
      %713 = vmatprep.subr.mxu0 0.0
      %714 = vmatpush1.msra.mxu0 %v711
      %715 = vmatprep.subr.mxu0 0.0
      %716 = vmatpush1.msra.mxu0 0.0
      %717 = vmatprep.subr.mxu0 0.0
      %718 = vmatpush1.msra.mxu0 0.0
      %719 = vmatprep.subr.mxu0 0.0
      %720 = vmatpush1.msra.mxu0 0.0
      %721 = vmatprep.subr.mxu0 0.0
      %722 = vmatpush1.msra.mxu0 0.0
      %723 = vmatprep.subr.mxu0 0.0
      %724 = vmatpush1.msra.mxu0 0.0
      %725 = vmatprep.subr.mxu0 0.0
      %726 = vmatpush1.msra.mxu0 0.0
      %727 = vmatprep.subr.mxu0 0.0
      %728 = vmatpush1.msra.mxu0 0.0
      %729 = vmatprep.subr.mxu0 0.0
      %730 = vmatpush1.msra.mxu0 0.0
      %731 = vmatprep.subr.mxu0 0.0
      %732 = vmatpush1.msra.mxu0 0.0
      %733 = vmatprep.subr.mxu0 0.0
      %734 = vmatpush1.msra.mxu0 0.0
      %735 = vmatprep.subr.mxu0 0.0
      %736 = vmatpush1.msra.mxu0 0.0
      %737 = vmatprep.subr.mxu0 0.0
      %738 = vmatpush1.msra.mxu0 0.0
      %739 = vmatprep.subr.mxu0 0.0
      %740 = vmatpush1.msra.mxu0 0.0
      %741 = vmatprep.subr.mxu0 0.0
      %742 = vmatpush1.msra.mxu0 0.0
      %743 = vmatprep.subr.mxu0 0.0
      %744 = vmatpush1.msra.mxu0 0.0
      %745 = vmatprep.subr.mxu0 0.0
      %746 = vmatpush1.msra.mxu0 0.0
      %747 = vmatprep.subr.mxu0 0.0
      %748 = vmatpush1.msra.mxu0 0.0
      %749 = vmatprep.subr.mxu0 0.0
      %750 = vmatpush1.msra.mxu0 0.0
      %751 = vmatprep.subr.mxu0 0.0
      %752 = vmatpush1.msra.mxu0 0.0
      %753 = vmatprep.subr.mxu0 0.0
      %754 = vmatpush1.msra.mxu0 0.0
      %755 = vmatprep.subr.mxu0 0.0
      %756 = vmatpush1.msra.mxu0 0.0
      %757 = vmatprep.subr.mxu0 0.0
      %758 = vmatpush1.msra.mxu0 0.0
      %759 = vmatprep.subr.mxu0 0.0
      %760 = vmatpush1.msra.mxu0 0.0
      %761 = vmatprep.subr.mxu0 0.0
      %762 = vmatpush1.msra.mxu0 0.0
      %763 = vmatprep.subr.mxu0 0.0
      %764 = vmatpush1.msra.mxu0 0.0
      %765 = vmatprep.subr.mxu0 0.0
      %766 = vmatpush1.msra.mxu0 0.0
      %767 = vmatprep.subr.mxu0 0.0
      %768 = vmatpush1.msra.mxu0 0.0
      %769 = vmatprep.subr.mxu0 0.0
      %770 = vmatpush1.msra.mxu0 0.0
      %771 = vmatprep.subr.mxu0 0.0
      %772 = vmatpush1.msra.mxu0 0.0
      %773 = vmatprep.subr.mxu0 0.0
      %774 = vmatpush1.msra.mxu0 0.0
      %775 = vmatprep.subr.mxu0 0.0
      %776 = vmatpush1.msra.mxu0 0.0
      %777 = vmatprep.mubr.f32.mxu0 0.0
      %778 = vmatmul.mubr.f32.gmra.mrb[0].mxu0 %v687
      %v779 = vpop.f32.mrb[0].mxu0
      %v780 = vadd.f32 0.0, %v779
      %v781 = vpop.f32.mrb[0].mxu0
      %782 = vmatprep.mubr.f32.mxu0 0.0
      %783 = vmatmul.mubr.f32.gmra.mrb[0].mxu0 %v690
      %v784 = vpop.f32.mrb[0].mxu0
      %v785 = vadd.f32 0.0, %v784
      %v786 = vpop.f32.mrb[0].mxu0
      %787 = vmatprep.mubr.f32.mxu0 0.0
      %788 = vmatmul.mubr.f32.gmra.mrb[0].mxu0 %v693
      %v789 = vpop.f32.mrb[0].mxu0
      %v790 = vadd.f32 0.0, %v789
      %v791 = vpop.f32.mrb[0].mxu0
      %792 = vmatprep.mubr.f32.mxu0 0.0
      %793 = vmatmul.mubr.f32.gmra.mrb[0].mxu0 %v696
      %v794 = vpop.f32.mrb[0].mxu0
      %v795 = vadd.f32 0.0, %v794
      %v796 = vpop.f32.mrb[0].mxu0
      %797 = vmatprep.mubr.f32.mxu0 0.0
      %798 = vmatmul.mubr.f32.gmra.mrb[0].mxu0 %v699
      %v799 = vpop.f32.mrb[0].mxu0
      %v800 = vadd.f32 0.0, %v799
      %v801 = vpop.f32.mrb[0].mxu0
      %802 = vmatprep.mubr.f32.mxu0 0.0
      %803 = vmatmul.mubr.f32.gmra.mrb[0].mxu0 %v702
      %v804 = vpop.f32.mrb[0].mxu0
      %v805 = vadd.f32 0.0, %v804
      %v806 = vpop.f32.mrb[0].mxu0
      %807 = vmatprep.mubr.f32.mxu0 0.0
      %808 = vmatmul.mubr.f32.gmra.mrb[0].mxu0 %v705
      %v809 = vpop.f32.mrb[0].mxu0
      %v810 = vadd.f32 0.0, %v809
      %v811 = vpop.f32.mrb[0].mxu0
      %812 = vmatprep.mubr.f32.mxu0 0.0
      %813 = vmatmul.mubr.f32.gmra.mrb[0].mxu0 %v708
      %v814 = vpop.f32.mrb[0].mxu0
      %v815 = vadd.f32 0.0, %v814
      %v816 = vpop.f32.mrb[0].mxu0
      %817 = vdwg.mxu0
      %v818 = vadd.f32 %v676, %v780
      %v819 = vadd.f32 %v677, %v785
      %v820 = vadd.f32 %v678, %v790
      %v821 = vadd.f32 %v679, %v795
      %v822 = vadd.f32 %v680, %v800
      %v823 = vadd.f32 %v681, %v805
      %v824 = vadd.f32 %v682, %v810
      %v825 = vadd.f32 %v683, %v815
      %s826 = scalar_lea.vmem %s1, 16
      %v827 = vld [vmem:[%s826] sm:$0xf]
      %v829 = vsel %vm233, %v224, 0
      %v832 = vsel %vm233, %v225, 0
      %v835 = vsel %vm233, %v226, 0
      %v838 = vsel %vm233, %v227, 0
      %v841 = vsel %vm233, %v228, 0
      %v844 = vsel %vm233, %v229, 0
      %v847 = vsel %vm233, %v230, 0
      %v850 = vsel %vm233, %v231, 0
      %v853 = vsel %vm258, %v827, 0
      %855 = vmatprep.subr.mxu0 0.0
      %856 = vmatpush1.msra.mxu0 %v853
      %857 = vmatprep.subr.mxu0 0.0
      %858 = vmatpush1.msra.mxu0 0.0
      %859 = vmatprep.subr.mxu0 0.0
      %860 = vmatpush1.msra.mxu0 0.0
      %861 = vmatprep.subr.mxu0 0.0
      %862 = vmatpush1.msra.mxu0 0.0
      %863 = vmatprep.subr.mxu0 0.0
      %864 = vmatpush1.msra.mxu0 0.0
      %865 = vmatprep.subr.mxu0 0.0
      %866 = vmatpush1.msra.mxu0 0.0
      %867 = vmatprep.subr.mxu0 0.0
      %868 = vmatpush1.msra.mxu0 0.0
      %869 = vmatprep.subr.mxu0 0.0
      %870 = vmatpush1.msra.mxu0 0.0
      %871 = vmatprep.subr.mxu0 0.0
      %872 = vmatpush1.msra.mxu0 0.0
      %873 = vmatprep.subr.mxu0 0.0
      %874 = vmatpush1.msra.mxu0 0.0
      %875 = vmatprep.subr.mxu0 0.0
      %876 = vmatpush1.msra.mxu0 0.0
      %877 = vmatprep.subr.mxu0 0.0
      %878 = vmatpush1.msra.mxu0 0.0
      %879 = vmatprep.subr.mxu0 0.0
      %880 = vmatpush1.msra.mxu0 0.0
      %881 = vmatprep.subr.mxu0 0.0
      %882 = vmatpush1.msra.mxu0 0.0
      %883 = vmatprep.subr.mxu0 0.0
      %884 = vmatpush1.msra.mxu0 0.0
      %885 = vmatprep.subr.mxu0 0.0
      %886 = vmatpush1.msra.mxu0 0.0
      %887 = vmatprep.subr.mxu0 0.0
      %888 = vmatpush1.msra.mxu0 0.0
      %889 = vmatprep.subr.mxu0 0.0
      %890 = vmatpush1.msra.mxu0 0.0
      %891 = vmatprep.subr.mxu0 0.0
      %892 = vmatpush1.msra.mxu0 0.0
      %893 = vmatprep.subr.mxu0 0.0
      %894 = vmatpush1.msra.mxu0 0.0
      %895 = vmatprep.subr.mxu0 0.0
      %896 = vmatpush1.msra.mxu0 0.0
      %897 = vmatprep.subr.mxu0 0.0
      %898 = vmatpush1.msra.mxu0 0.0
      %899 = vmatprep.subr.mxu0 0.0
      %900 = vmatpush1.msra.mxu0 0.0
      %901 = vmatprep.subr.mxu0 0.0
      %902 = vmatpush1.msra.mxu0 0.0
      %903 = vmatprep.subr.mxu0 0.0
      %904 = vmatpush1.msra.mxu0 0.0
      %905 = vmatprep.subr.mxu0 0.0
      %906 = vmatpush1.msra.mxu0 0.0
      %907 = vmatprep.subr.mxu0 0.0
      %908 = vmatpush1.msra.mxu0 0.0
      %909 = vmatprep.subr.mxu0 0.0
      %910 = vmatpush1.msra.mxu0 0.0
      %911 = vmatprep.subr.mxu0 0.0
      %912 = vmatpush1.msra.mxu0 0.0
      %913 = vmatprep.subr.mxu0 0.0
      %914 = vmatpush1.msra.mxu0 0.0
      %915 = vmatprep.subr.mxu0 0.0
      %916 = vmatpush1.msra.mxu0 0.0
      %917 = vmatprep.subr.mxu0 0.0
      %918 = vmatpush1.msra.mxu0 0.0
      %919 = vmatprep.mubr.f32.mxu0 0.0
      %920 = vmatmul.mubr.f32.gmra.mrb[0].mxu0 %v829
      %v921 = vpop.f32.mrb[0].mxu0
      %v922 = vadd.f32 0.0, %v921
      %v923 = vpop.f32.mrb[0].mxu0
      %924 = vmatprep.mubr.f32.mxu0 0.0
      %925 = vmatmul.mubr.f32.gmra.mrb[0].mxu0 %v832
      %v926 = vpop.f32.mrb[0].mxu0
      %v927 = vadd.f32 0.0, %v926
      %v928 = vpop.f32.mrb[0].mxu0
      %929 = vmatprep.mubr.f32.mxu0 0.0
      %930 = vmatmul.mubr.f32.gmra.mrb[0].mxu0 %v835
      %v931 = vpop.f32.mrb[0].mxu0
      %v932 = vadd.f32 0.0, %v931
      %v933 = vpop.f32.mrb[0].mxu0
      %934 = vmatprep.mubr.f32.mxu0 0.0
      %935 = vmatmul.mubr.f32.gmra.mrb[0].mxu0 %v838
      %v936 = vpop.f32.mrb[0].mxu0
      %v937 = vadd.f32 0.0, %v936
      %v938 = vpop.f32.mrb[0].mxu0
      %939 = vmatprep.mubr.f32.mxu0 0.0
      %940 = vmatmul.mubr.f32.gmra.mrb[0].mxu0 %v841
      %v941 = vpop.f32.mrb[0].mxu0
      %v942 = vadd.f32 0.0, %v941
      %v943 = vpop.f32.mrb[0].mxu0
      %944 = vmatprep.mubr.f32.mxu0 0.0
      %945 = vmatmul.mubr.f32.gmra.mrb[0].mxu0 %v844
      %v946 = vpop.f32.mrb[0].mxu0
      %v947 = vadd.f32 0.0, %v946
      %v948 = vpop.f32.mrb[0].mxu0
      %949 = vmatprep.mubr.f32.mxu0 0.0
      %950 = vmatmul.mubr.f32.gmra.mrb[0].mxu0 %v847
      %v951 = vpop.f32.mrb[0].mxu0
      %v952 = vadd.f32 0.0, %v951
      %v953 = vpop.f32.mrb[0].mxu0
      %954 = vmatprep.mubr.f32.mxu0 0.0
      %955 = vmatmul.mubr.f32.gmra.mrb[0].mxu0 %v850
      %v956 = vpop.f32.mrb[0].mxu0
      %v957 = vadd.f32 0.0, %v956
      %v958 = vpop.f32.mrb[0].mxu0
      %959 = vdwg.mxu0
      %v960 = vadd.f32 %v818, %v922
      %v961 = vadd.f32 %v819, %v927
      %v962 = vadd.f32 %v820, %v932
      %v963 = vadd.f32 %v821, %v937
      %v964 = vadd.f32 %v822, %v942
      %v965 = vadd.f32 %v823, %v947
      %v966 = vadd.f32 %v824, %v952
      %v967 = vadd.f32 %v825, %v957
      %v976 = vrot.slane %v207, 1
      %v977 = vrot.slane %v208, 1
      %v978 = vsel %vm525, %v976, %v977
      %v979 = vrot.slane %v209, 1
      %v980 = vrot.slane %v210, 1
      %v981 = vsel %vm525, %v979, %v980
      %v982 = vrot.slane %v211, 1
      %v983 = vrot.slane %v212, 1
      %v984 = vsel %vm525, %v982, %v983
      %v985 = vrot.slane %v213, 1
      %v986 = vrot.slane %v214, 1
      %v987 = vsel %vm525, %v985, %v986
      %v988 = vrot.slane %v215, 1
      %v989 = vrot.slane %v216, 1
      %v990 = vsel %vm525, %v988, %v989
      %v991 = vrot.slane %v217, 1
      %v992 = vrot.slane %v218, 1
      %v993 = vsel %vm525, %v991, %v992
      %v994 = vrot.slane %v219, 1
      %v995 = vrot.slane %v220, 1
      %v996 = vsel %vm525, %v994, %v995
      %v997 = vrot.slane %v221, 1
      %v998 = vrot.slane %v222, 1
      %v999 = vsel %vm525, %v997, %v998
      %s1000 = scalar_lea.vmem %s1, 20
      %v1001 = vld [vmem:[%s1000] sm:$0xf]
      %v1002 = vsel %vm233, %v978, 0
      %v1004 = vsel %vm233, %v981, 0
      %v1006 = vsel %vm233, %v984, 0
      %v1008 = vsel %vm233, %v987, 0
      %v1010 = vsel %vm233, %v990, 0
      %v1012 = vsel %vm233, %v993, 0
      %v1014 = vsel %vm233, %v996, 0
      %v1016 = vsel %vm233, %v999, 0
      %v1019 = vsel %vm258, %v1001, 0
      %1021 = vmatprep.subr.mxu0 0.0
      %1022 = vmatpush1.msra.mxu0 %v1019
      %1023 = vmatprep.subr.mxu0 0.0
      %1024 = vmatpush1.msra.mxu0 0.0
      %1025 = vmatprep.subr.mxu0 0.0
      %1026 = vmatpush1.msra.mxu0 0.0
      %1027 = vmatprep.subr.mxu0 0.0
      %1028 = vmatpush1.msra.mxu0 0.0
      %1029 = vmatprep.subr.mxu0 0.0
      %1030 = vmatpush1.msra.mxu0 0.0
      %1031 = vmatprep.subr.mxu0 0.0
      %1032 = vmatpush1.msra.mxu0 0.0
      %1033 = vmatprep.subr.mxu0 0.0
      %1034 = vmatpush1.msra.mxu0 0.0
      %1035 = vmatprep.subr.mxu0 0.0
      %1036 = vmatpush1.msra.mxu0 0.0
      %1037 = vmatprep.subr.mxu0 0.0
      %1038 = vmatpush1.msra.mxu0 0.0
      %1039 = vmatprep.subr.mxu0 0.0
      %1040 = vmatpush1.msra.mxu0 0.0
      %1041 = vmatprep.subr.mxu0 0.0
      %1042 = vmatpush1.msra.mxu0 0.0
      %1043 = vmatprep.subr.mxu0 0.0
      %1044 = vmatpush1.msra.mxu0 0.0
      %1045 = vmatprep.subr.mxu0 0.0
      %1046 = vmatpush1.msra.mxu0 0.0
      %1047 = vmatprep.subr.mxu0 0.0
      %1048 = vmatpush1.msra.mxu0 0.0
      %1049 = vmatprep.subr.mxu0 0.0
      %1050 = vmatpush1.msra.mxu0 0.0
      %1051 = vmatprep.subr.mxu0 0.0
      %1052 = vmatpush1.msra.mxu0 0.0
      %1053 = vmatprep.subr.mxu0 0.0
      %1054 = vmatpush1.msra.mxu0 0.0
      %1055 = vmatprep.subr.mxu0 0.0
      %1056 = vmatpush1.msra.mxu0 0.0
      %1057 = vmatprep.subr.mxu0 0.0
      %1058 = vmatpush1.msra.mxu0 0.0
      %1059 = vmatprep.subr.mxu0 0.0
      %1060 = vmatpush1.msra.mxu0 0.0
      %1061 = vmatprep.subr.mxu0 0.0
      %1062 = vmatpush1.msra.mxu0 0.0
      %1063 = vmatprep.subr.mxu0 0.0
      %1064 = vmatpush1.msra.mxu0 0.0
      %1065 = vmatprep.subr.mxu0 0.0
      %1066 = vmatpush1.msra.mxu0 0.0
      %1067 = vmatprep.subr.mxu0 0.0
      %1068 = vmatpush1.msra.mxu0 0.0
      %1069 = vmatprep.subr.mxu0 0.0
      %1070 = vmatpush1.msra.mxu0 0.0
      %1071 = vmatprep.subr.mxu0 0.0
      %1072 = vmatpush1.msra.mxu0 0.0
      %1073 = vmatprep.subr.mxu0 0.0
      %1074 = vmatpush1.msra.mxu0 0.0
      %1075 = vmatprep.subr.mxu0 0.0
      %1076 = vmatpush1.msra.mxu0 0.0
      %1077 = vmatprep.subr.mxu0 0.0
      %1078 = vmatpush1.msra.mxu0 0.0
      %1079 = vmatprep.subr.mxu0 0.0
      %1080 = vmatpush1.msra.mxu0 0.0
      %1081 = vmatprep.subr.mxu0 0.0
      %1082 = vmatpush1.msra.mxu0 0.0
      %1083 = vmatprep.subr.mxu0 0.0
      %1084 = vmatpush1.msra.mxu0 0.0
      %1085 = vmatprep.mubr.f32.mxu0 0.0
      %1086 = vmatmul.mubr.f32.gmra.mrb[0].mxu0 %v1002
      %v1087 = vpop.f32.mrb[0].mxu0
      %v1088 = vadd.f32 0.0, %v1087
      %v1089 = vpop.f32.mrb[0].mxu0
      %1090 = vmatprep.mubr.f32.mxu0 0.0
      %1091 = vmatmul.mubr.f32.gmra.mrb[0].mxu0 %v1004
      %v1092 = vpop.f32.mrb[0].mxu0
      %v1093 = vadd.f32 0.0, %v1092
      %v1094 = vpop.f32.mrb[0].mxu0
      %1095 = vmatprep.mubr.f32.mxu0 0.0
      %1096 = vmatmul.mubr.f32.gmra.mrb[0].mxu0 %v1006
      %v1097 = vpop.f32.mrb[0].mxu0
      %v1098 = vadd.f32 0.0, %v1097
      %v1099 = vpop.f32.mrb[0].mxu0
      %1100 = vmatprep.mubr.f32.mxu0 0.0
      %1101 = vmatmul.mubr.f32.gmra.mrb[0].mxu0 %v1008
      %v1102 = vpop.f32.mrb[0].mxu0
      %v1103 = vadd.f32 0.0, %v1102
      %v1104 = vpop.f32.mrb[0].mxu0
      %1105 = vmatprep.mubr.f32.mxu0 0.0
      %1106 = vmatmul.mubr.f32.gmra.mrb[0].mxu0 %v1010
      %v1107 = vpop.f32.mrb[0].mxu0
      %v1108 = vadd.f32 0.0, %v1107
      %v1109 = vpop.f32.mrb[0].mxu0
      %1110 = vmatprep.mubr.f32.mxu0 0.0
      %1111 = vmatmul.mubr.f32.gmra.mrb[0].mxu0 %v1012
      %v1112 = vpop.f32.mrb[0].mxu0
      %v1113 = vadd.f32 0.0, %v1112
      %v1114 = vpop.f32.mrb[0].mxu0
      %1115 = vmatprep.mubr.f32.mxu0 0.0
      %1116 = vmatmul.mubr.f32.gmra.mrb[0].mxu0 %v1014
      %v1117 = vpop.f32.mrb[0].mxu0
      %v1118 = vadd.f32 0.0, %v1117
      %v1119 = vpop.f32.mrb[0].mxu0
      %1120 = vmatprep.mubr.f32.mxu0 0.0
      %1121 = vmatmul.mubr.f32.gmra.mrb[0].mxu0 %v1016
      %v1122 = vpop.f32.mrb[0].mxu0
      %v1123 = vadd.f32 0.0, %v1122
      %v1124 = vpop.f32.mrb[0].mxu0
      %1125 = vdwg.mxu0
      %v1126 = vadd.f32 %v960, %v1088
      %v1127 = vadd.f32 %v961, %v1093
      %v1128 = vadd.f32 %v962, %v1098
      %v1129 = vadd.f32 %v963, %v1103
      %v1130 = vadd.f32 %v964, %v1108
      %v1131 = vadd.f32 %v965, %v1113
      %v1132 = vadd.f32 %v966, %v1118
      %v1133 = vadd.f32 %v967, %v1123
      %s1134 = scalar_lea.vmem %s1, 24
      %v1135 = vld [vmem:[%s1134] sm:$0xf]
      %v1137 = vsel %vm233, %v194, 0
      %v1140 = vsel %vm258, %v1135, 0
      %1142 = vmatprep.subr.mxu0 0.0
      %1143 = vmatpush1.msra.mxu0 %v1140
      %1144 = vmatprep.subr.mxu0 0.0
      %1145 = vmatpush1.msra.mxu0 0.0
      %1146 = vmatprep.subr.mxu0 0.0
      %1147 = vmatpush1.msra.mxu0 0.0
      %1148 = vmatprep.subr.mxu0 0.0
      %1149 = vmatpush1.msra.mxu0 0.0
      %1150 = vmatprep.subr.mxu0 0.0
      %1151 = vmatpush1.msra.mxu0 0.0
      %1152 = vmatprep.subr.mxu0 0.0
      %1153 = vmatpush1.msra.mxu0 0.0
      %1154 = vmatprep.subr.mxu0 0.0
      %1155 = vmatpush1.msra.mxu0 0.0
      %1156 = vmatprep.subr.mxu0 0.0
      %1157 = vmatpush1.msra.mxu0 0.0
      %1158 = vmatprep.subr.mxu0 0.0
      %1159 = vmatpush1.msra.mxu0 0.0
      %1160 = vmatprep.subr.mxu0 0.0
      %1161 = vmatpush1.msra.mxu0 0.0
      %1162 = vmatprep.subr.mxu0 0.0
      %1163 = vmatpush1.msra.mxu0 0.0
      %1164 = vmatprep.subr.mxu0 0.0
      %1165 = vmatpush1.msra.mxu0 0.0
      %1166 = vmatprep.subr.mxu0 0.0
      %1167 = vmatpush1.msra.mxu0 0.0
      %1168 = vmatprep.subr.mxu0 0.0
      %1169 = vmatpush1.msra.mxu0 0.0
      %1170 = vmatprep.subr.mxu0 0.0
      %1171 = vmatpush1.msra.mxu0 0.0
      %1172 = vmatprep.subr.mxu0 0.0
      %1173 = vmatpush1.msra.mxu0 0.0
      %1174 = vmatprep.subr.mxu0 0.0
      %1175 = vmatpush1.msra.mxu0 0.0
      %1176 = vmatprep.subr.mxu0 0.0
      %1177 = vmatpush1.msra.mxu0 0.0
      %1178 = vmatprep.subr.mxu0 0.0
      %1179 = vmatpush1.msra.mxu0 0.0
      %1180 = vmatprep.subr.mxu0 0.0
      %1181 = vmatpush1.msra.mxu0 0.0
      %1182 = vmatprep.subr.mxu0 0.0
      %1183 = vmatpush1.msra.mxu0 0.0
      %1184 = vmatprep.subr.mxu0 0.0
      %1185 = vmatpush1.msra.mxu0 0.0
      %1186 = vmatprep.subr.mxu0 0.0
      %1187 = vmatpush1.msra.mxu0 0.0
      %1188 = vmatprep.subr.mxu0 0.0
      %1189 = vmatpush1.msra.mxu0 0.0
      %1190 = vmatprep.subr.mxu0 0.0
      %1191 = vmatpush1.msra.mxu0 0.0
      %1192 = vmatprep.subr.mxu0 0.0
      %1193 = vmatpush1.msra.mxu0 0.0
      %1194 = vmatprep.subr.mxu0 0.0
      %1195 = vmatpush1.msra.mxu0 0.0
      %1196 = vmatprep.subr.mxu0 0.0
      %1197 = vmatpush1.msra.mxu0 0.0
      %1198 = vmatprep.subr.mxu0 0.0
      %1199 = vmatpush1.msra.mxu0 0.0
      %1200 = vmatprep.subr.mxu0 0.0
      %1201 = vmatpush1.msra.mxu0 0.0
      %1202 = vmatprep.subr.mxu0 0.0
      %1203 = vmatpush1.msra.mxu0 0.0
      %1204 = vmatprep.subr.mxu0 0.0
      %1205 = vmatpush1.msra.mxu0 0.0
      %1206 = vmatprep.mubr.f32.mxu0 0.0
      %1207 = vmatmul.mubr.f32.gmra.mrb[0].mxu0 %v238
      %v1208 = vpop.f32.mrb[0].mxu0
      %v1209 = vadd.f32 0.0, %v1208
      %v1210 = vpop.f32.mrb[0].mxu0
      %1211 = vmatprep.mubr.f32.mxu0 0.0
      %1212 = vmatmul.mubr.f32.gmra.mrb[0].mxu0 %v241
      %v1213 = vpop.f32.mrb[0].mxu0
      %v1214 = vadd.f32 0.0, %v1213
      %v1215 = vpop.f32.mrb[0].mxu0
      %1216 = vmatprep.mubr.f32.mxu0 0.0
      %1217 = vmatmul.mubr.f32.gmra.mrb[0].mxu0 %v244
      %v1218 = vpop.f32.mrb[0].mxu0
      %v1219 = vadd.f32 0.0, %v1218
      %v1220 = vpop.f32.mrb[0].mxu0
      %1221 = vmatprep.mubr.f32.mxu0 0.0
      %1222 = vmatmul.mubr.f32.gmra.mrb[0].mxu0 %v247
      %v1223 = vpop.f32.mrb[0].mxu0
      %v1224 = vadd.f32 0.0, %v1223
      %v1225 = vpop.f32.mrb[0].mxu0
      %1226 = vmatprep.mubr.f32.mxu0 0.0
      %1227 = vmatmul.mubr.f32.gmra.mrb[0].mxu0 %v250
      %v1228 = vpop.f32.mrb[0].mxu0
      %v1229 = vadd.f32 0.0, %v1228
      %v1230 = vpop.f32.mrb[0].mxu0
      %1231 = vmatprep.mubr.f32.mxu0 0.0
      %1232 = vmatmul.mubr.f32.gmra.mrb[0].mxu0 %v253
      %v1233 = vpop.f32.mrb[0].mxu0
      %v1234 = vadd.f32 0.0, %v1233
      %v1235 = vpop.f32.mrb[0].mxu0
      %1236 = vmatprep.mubr.f32.mxu0 0.0
      %1237 = vmatmul.mubr.f32.gmra.mrb[0].mxu0 %v256
      %v1238 = vpop.f32.mrb[0].mxu0
      %v1239 = vadd.f32 0.0, %v1238
      %v1240 = vpop.f32.mrb[0].mxu0
      %1241 = vmatprep.mubr.f32.mxu0 0.0
      %1242 = vmatmul.mubr.f32.gmra.mrb[0].mxu0 %v1137
      %v1243 = vpop.f32.mrb[0].mxu0
      %v1244 = vadd.f32 0.0, %v1243
      %v1245 = vpop.f32.mrb[0].mxu0
      %1246 = vdwg.mxu0
      %v1247 = vadd.f32 %v1126, %v1209
      %v1248 = vadd.f32 %v1127, %v1214
      %v1249 = vadd.f32 %v1128, %v1219
      %v1250 = vadd.f32 %v1129, %v1224
      %v1251 = vadd.f32 %v1130, %v1229
      %v1252 = vadd.f32 %v1131, %v1234
      %v1253 = vadd.f32 %v1132, %v1239
      %v1254 = vadd.f32 %v1133, %v1244
      %s1255 = scalar_lea.vmem %s1, 28
      %v1256 = vld [vmem:[%s1255] sm:$0xf]
      %v1258 = vsel %vm233, %v205, 0
      %v1261 = vsel %vm258, %v1256, 0
      %1263 = vmatprep.subr.mxu0 0.0
      %1264 = vmatpush1.msra.mxu0 %v1261
      %1265 = vmatprep.subr.mxu0 0.0
      %1266 = vmatpush1.msra.mxu0 0.0
      %1267 = vmatprep.subr.mxu0 0.0
      %1268 = vmatpush1.msra.mxu0 0.0
      %1269 = vmatprep.subr.mxu0 0.0
      %1270 = vmatpush1.msra.mxu0 0.0
      %1271 = vmatprep.subr.mxu0 0.0
      %1272 = vmatpush1.msra.mxu0 0.0
      %1273 = vmatprep.subr.mxu0 0.0
      %1274 = vmatpush1.msra.mxu0 0.0
      %1275 = vmatprep.subr.mxu0 0.0
      %1276 = vmatpush1.msra.mxu0 0.0
      %1277 = vmatprep.subr.mxu0 0.0
      %1278 = vmatpush1.msra.mxu0 0.0
      %1279 = vmatprep.subr.mxu0 0.0
      %1280 = vmatpush1.msra.mxu0 0.0
      %1281 = vmatprep.subr.mxu0 0.0
      %1282 = vmatpush1.msra.mxu0 0.0
      %1283 = vmatprep.subr.mxu0 0.0
      %1284 = vmatpush1.msra.mxu0 0.0
      %1285 = vmatprep.subr.mxu0 0.0
      %1286 = vmatpush1.msra.mxu0 0.0
      %1287 = vmatprep.subr.mxu0 0.0
      %1288 = vmatpush1.msra.mxu0 0.0
      %1289 = vmatprep.subr.mxu0 0.0
      %1290 = vmatpush1.msra.mxu0 0.0
      %1291 = vmatprep.subr.mxu0 0.0
      %1292 = vmatpush1.msra.mxu0 0.0
      %1293 = vmatprep.subr.mxu0 0.0
      %1294 = vmatpush1.msra.mxu0 0.0
      %1295 = vmatprep.subr.mxu0 0.0
      %1296 = vmatpush1.msra.mxu0 0.0
      %1297 = vmatprep.subr.mxu0 0.0
      %1298 = vmatpush1.msra.mxu0 0.0
      %1299 = vmatprep.subr.mxu0 0.0
      %1300 = vmatpush1.msra.mxu0 0.0
      %1301 = vmatprep.subr.mxu0 0.0
      %1302 = vmatpush1.msra.mxu0 0.0
      %1303 = vmatprep.subr.mxu0 0.0
      %1304 = vmatpush1.msra.mxu0 0.0
      %1305 = vmatprep.subr.mxu0 0.0
      %1306 = vmatpush1.msra.mxu0 0.0
      %1307 = vmatprep.subr.mxu0 0.0
      %1308 = vmatpush1.msra.mxu0 0.0
      %1309 = vmatprep.subr.mxu0 0.0
      %1310 = vmatpush1.msra.mxu0 0.0
      %1311 = vmatprep.subr.mxu0 0.0
      %1312 = vmatpush1.msra.mxu0 0.0
      %1313 = vmatprep.subr.mxu0 0.0
      %1314 = vmatpush1.msra.mxu0 0.0
      %1315 = vmatprep.subr.mxu0 0.0
      %1316 = vmatpush1.msra.mxu0 0.0
      %1317 = vmatprep.subr.mxu0 0.0
      %1318 = vmatpush1.msra.mxu0 0.0
      %1319 = vmatprep.subr.mxu0 0.0
      %1320 = vmatpush1.msra.mxu0 0.0
      %1321 = vmatprep.subr.mxu0 0.0
      %1322 = vmatpush1.msra.mxu0 0.0
      %1323 = vmatprep.subr.mxu0 0.0
      %1324 = vmatpush1.msra.mxu0 0.0
      %1325 = vmatprep.subr.mxu0 0.0
      %1326 = vmatpush1.msra.mxu0 0.0
      %1327 = vmatprep.mubr.f32.mxu0 0.0
      %1328 = vmatmul.mubr.f32.gmra.mrb[0].mxu0 %v381
      %v1329 = vpop.f32.mrb[0].mxu0
      %v1330 = vadd.f32 0.0, %v1329
      %v1331 = vpop.f32.mrb[0].mxu0
      %1332 = vmatprep.mubr.f32.mxu0 0.0
      %1333 = vmatmul.mubr.f32.gmra.mrb[0].mxu0 %v384
      %v1334 = vpop.f32.mrb[0].mxu0
      %v1335 = vadd.f32 0.0, %v1334
      %v1336 = vpop.f32.mrb[0].mxu0
      %1337 = vmatprep.mubr.f32.mxu0 0.0
      %1338 = vmatmul.mubr.f32.gmra.mrb[0].mxu0 %v387
      %v1339 = vpop.f32.mrb[0].mxu0
      %v1340 = vadd.f32 0.0, %v1339
      %v1341 = vpop.f32.mrb[0].mxu0
      %1342 = vmatprep.mubr.f32.mxu0 0.0
      %1343 = vmatmul.mubr.f32.gmra.mrb[0].mxu0 %v390
      %v1344 = vpop.f32.mrb[0].mxu0
      %v1345 = vadd.f32 0.0, %v1344
      %v1346 = vpop.f32.mrb[0].mxu0
      %1347 = vmatprep.mubr.f32.mxu0 0.0
      %1348 = vmatmul.mubr.f32.gmra.mrb[0].mxu0 %v393
      %v1349 = vpop.f32.mrb[0].mxu0
      %v1350 = vadd.f32 0.0, %v1349
      %v1351 = vpop.f32.mrb[0].mxu0
      %1352 = vmatprep.mubr.f32.mxu0 0.0
      %1353 = vmatmul.mubr.f32.gmra.mrb[0].mxu0 %v396
      %v1354 = vpop.f32.mrb[0].mxu0
      %v1355 = vadd.f32 0.0, %v1354
      %v1356 = vpop.f32.mrb[0].mxu0
      %1357 = vmatprep.mubr.f32.mxu0 0.0
      %1358 = vmatmul.mubr.f32.gmra.mrb[0].mxu0 %v399
      %v1359 = vpop.f32.mrb[0].mxu0
      %v1360 = vadd.f32 0.0, %v1359
      %v1361 = vpop.f32.mrb[0].mxu0
      %1362 = vmatprep.mubr.f32.mxu0 0.0
      %1363 = vmatmul.mubr.f32.gmra.mrb[0].mxu0 %v1258
      %v1364 = vpop.f32.mrb[0].mxu0
      %v1365 = vadd.f32 0.0, %v1364
      %v1366 = vpop.f32.mrb[0].mxu0
      %1367 = vdwg.mxu0
      %v1368 = vadd.f32 %v1247, %v1330
      %v1369 = vadd.f32 %v1248, %v1335
      %v1370 = vadd.f32 %v1249, %v1340
      %v1371 = vadd.f32 %v1250, %v1345
      %v1372 = vadd.f32 %v1251, %v1350
      %v1373 = vadd.f32 %v1252, %v1355
      %v1374 = vadd.f32 %v1253, %v1360
      %v1375 = vadd.f32 %v1254, %v1365
      %v1377 = vrot.slane %v194, 1
      %v1378 = vrot.slane %v195, 1
      %v1379 = vsel %vm525, %v1377, %v1378
      %s1380 = scalar_lea.vmem %s1, 32
      %v1381 = vld [vmem:[%s1380] sm:$0xf]
      %v1382 = vsel %vm233, %v1379, 0
      %v1385 = vsel %vm258, %v1381, 0
      %1387 = vmatprep.subr.mxu0 0.0
      %1388 = vmatpush1.msra.mxu0 %v1385
      %1389 = vmatprep.subr.mxu0 0.0
      %1390 = vmatpush1.msra.mxu0 0.0
      %1391 = vmatprep.subr.mxu0 0.0
      %1392 = vmatpush1.msra.mxu0 0.0
      %1393 = vmatprep.subr.mxu0 0.0
      %1394 = vmatpush1.msra.mxu0 0.0
      %1395 = vmatprep.subr.mxu0 0.0
      %1396 = vmatpush1.msra.mxu0 0.0
      %1397 = vmatprep.subr.mxu0 0.0
      %1398 = vmatpush1.msra.mxu0 0.0
      %1399 = vmatprep.subr.mxu0 0.0
      %1400 = vmatpush1.msra.mxu0 0.0
      %1401 = vmatprep.subr.mxu0 0.0
      %1402 = vmatpush1.msra.mxu0 0.0
      %1403 = vmatprep.subr.mxu0 0.0
      %1404 = vmatpush1.msra.mxu0 0.0
      %1405 = vmatprep.subr.mxu0 0.0
      %1406 = vmatpush1.msra.mxu0 0.0
      %1407 = vmatprep.subr.mxu0 0.0
      %1408 = vmatpush1.msra.mxu0 0.0
      %1409 = vmatprep.subr.mxu0 0.0
      %1410 = vmatpush1.msra.mxu0 0.0
      %1411 = vmatprep.subr.mxu0 0.0
      %1412 = vmatpush1.msra.mxu0 0.0
      %1413 = vmatprep.subr.mxu0 0.0
      %1414 = vmatpush1.msra.mxu0 0.0
      %1415 = vmatprep.subr.mxu0 0.0
      %1416 = vmatpush1.msra.mxu0 0.0
      %1417 = vmatprep.subr.mxu0 0.0
      %1418 = vmatpush1.msra.mxu0 0.0
      %1419 = vmatprep.subr.mxu0 0.0
      %1420 = vmatpush1.msra.mxu0 0.0
      %1421 = vmatprep.subr.mxu0 0.0
      %1422 = vmatpush1.msra.mxu0 0.0
      %1423 = vmatprep.subr.mxu0 0.0
      %1424 = vmatpush1.msra.mxu0 0.0
      %1425 = vmatprep.subr.mxu0 0.0
      %1426 = vmatpush1.msra.mxu0 0.0
      %1427 = vmatprep.subr.mxu0 0.0
      %1428 = vmatpush1.msra.mxu0 0.0
      %1429 = vmatprep.subr.mxu0 0.0
      %1430 = vmatpush1.msra.mxu0 0.0
      %1431 = vmatprep.subr.mxu0 0.0
      %1432 = vmatpush1.msra.mxu0 0.0
      %1433 = vmatprep.subr.mxu0 0.0
      %1434 = vmatpush1.msra.mxu0 0.0
      %1435 = vmatprep.subr.mxu0 0.0
      %1436 = vmatpush1.msra.mxu0 0.0
      %1437 = vmatprep.subr.mxu0 0.0
      %1438 = vmatpush1.msra.mxu0 0.0
      %1439 = vmatprep.subr.mxu0 0.0
      %1440 = vmatpush1.msra.mxu0 0.0
      %1441 = vmatprep.subr.mxu0 0.0
      %1442 = vmatpush1.msra.mxu0 0.0
      %1443 = vmatprep.subr.mxu0 0.0
      %1444 = vmatpush1.msra.mxu0 0.0
      %1445 = vmatprep.subr.mxu0 0.0
      %1446 = vmatpush1.msra.mxu0 0.0
      %1447 = vmatprep.subr.mxu0 0.0
      %1448 = vmatpush1.msra.mxu0 0.0
      %1449 = vmatprep.subr.mxu0 0.0
      %1450 = vmatpush1.msra.mxu0 0.0
      %1451 = vmatprep.mubr.f32.mxu0 0.0
      %1452 = vmatmul.mubr.f32.gmra.mrb[0].mxu0 %v554
      %v1453 = vpop.f32.mrb[0].mxu0
      %v1454 = vadd.f32 0.0, %v1453
      %v1455 = vpop.f32.mrb[0].mxu0
      %1456 = vmatprep.mubr.f32.mxu0 0.0
      %1457 = vmatmul.mubr.f32.gmra.mrb[0].mxu0 %v556
      %v1458 = vpop.f32.mrb[0].mxu0
      %v1459 = vadd.f32 0.0, %v1458
      %v1460 = vpop.f32.mrb[0].mxu0
      %1461 = vmatprep.mubr.f32.mxu0 0.0
      %1462 = vmatmul.mubr.f32.gmra.mrb[0].mxu0 %v558
      %v1463 = vpop.f32.mrb[0].mxu0
      %v1464 = vadd.f32 0.0, %v1463
      %v1465 = vpop.f32.mrb[0].mxu0
      %1466 = vmatprep.mubr.f32.mxu0 0.0
      %1467 = vmatmul.mubr.f32.gmra.mrb[0].mxu0 %v560
      %v1468 = vpop.f32.mrb[0].mxu0
      %v1469 = vadd.f32 0.0, %v1468
      %v1470 = vpop.f32.mrb[0].mxu0
      %1471 = vmatprep.mubr.f32.mxu0 0.0
      %1472 = vmatmul.mubr.f32.gmra.mrb[0].mxu0 %v562
      %v1473 = vpop.f32.mrb[0].mxu0
      %v1474 = vadd.f32 0.0, %v1473
      %v1475 = vpop.f32.mrb[0].mxu0
      %1476 = vmatprep.mubr.f32.mxu0 0.0
      %1477 = vmatmul.mubr.f32.gmra.mrb[0].mxu0 %v564
      %v1478 = vpop.f32.mrb[0].mxu0
      %v1479 = vadd.f32 0.0, %v1478
      %v1480 = vpop.f32.mrb[0].mxu0
      %1481 = vmatprep.mubr.f32.mxu0 0.0
      %1482 = vmatmul.mubr.f32.gmra.mrb[0].mxu0 %v566
      %v1483 = vpop.f32.mrb[0].mxu0
      %v1484 = vadd.f32 0.0, %v1483
      %v1485 = vpop.f32.mrb[0].mxu0
      %1486 = vmatprep.mubr.f32.mxu0 0.0
      %1487 = vmatmul.mubr.f32.gmra.mrb[0].mxu0 %v1382
      %v1488 = vpop.f32.mrb[0].mxu0
      %v1489 = vadd.f32 0.0, %v1488
      %v1490 = vpop.f32.mrb[0].mxu0
      %1491 = vdwg.mxu0
      %v1492 = vadd.f32 %v1368, %v1454
      %v1493 = vadd.f32 %v1369, %v1459
      %v1494 = vadd.f32 %v1370, %v1464
      %v1495 = vadd.f32 %v1371, %v1469
      %v1496 = vadd.f32 %v1372, %v1474
      %v1497 = vadd.f32 %v1373, %v1479
      %v1498 = vadd.f32 %v1374, %v1484
      %v1499 = vadd.f32 %v1375, %v1489
      %1500 = vst [vmem:[%s170] sm:$0xff] %v1492
      %1501 = vst [vmem:[%s170 + $0x8] sm:$0xff] %v1493
      %1502 = vst [vmem:[%s170 + $0x10] sm:$0xff] %v1494
      %1503 = vst [vmem:[%s170 + $0x18] sm:$0xff] %v1495
      %1504 = vst [vmem:[%s170 + $0x20] sm:$0xff] %v1496
      %1505 = vst [vmem:[%s170 + $0x28] sm:$0xff] %v1497
      %1506 = vst [vmem:[%s170 + $0x30] sm:$0xff] %v1498
      %1507 = vst [vmem:[%s170 + $0x38] sm:$0xff] %v1499
      %p1508 = scmp.lt.s32.totalorder %s14, 1
      %s1509 = scalar_select %p1508, %s14, 1
      %s1510 = smul.addr %s1509, 8
      %s1511 = smul.addr %s1510, 8
      %s1512 = scalar_lea.vmem %s3, %s1511
      // Predicated region
      $region33: #{a_call__.1} parent=31 // pred_check
        %p1513 = pneg %p100
      $region34: #{a_call__.1} parent=31 // pred_check_branch
        %1515 = sbr.rel (%p1513) target = $region36
      $region35: #{a_call__.1} parent=31 // pred_region
        _
      $region36: #{a_call__.1} parent=31 // pred_fallthru
        _
    $region32: #{a_call__.1} parent=5 // pred_fallthru
      _
    %p1516 = scmp.le.s32.totalorder 2, %s9
    // Predicated region
    $region37: #{a_call__.1} parent=5 // pred_check
      %p1517 = pneg %p1516
    $region38: #{a_call__.1} parent=5 // pred_check_branch
      %1519 = sbr.rel (%p1517) target = $region40
    $region39: #{a_call__.1} parent=5 // pred_region
      %s1520 = ssub.s32 %s9, 2
      // Predicated region
      $region41: #{a_call__.1} parent=39 // pred_check
        %p1521 = pneg %p106
      $region42: #{a_call__.1} parent=39 // pred_check_branch
        %1523 = sbr.rel (%p1521) target = $region44
      $region43: #{a_call__.1} parent=39 // pred_region
        %p1524 = scmp.lt.s32.totalorder %s15, 1
        %s1525 = scalar_select %p1524, %s15, 1
        %s1526 = smul.addr %s1525, 8
        %s1527 = smul.addr %s1526, 8
        %s1528 = scalar_lea.vmem %s3, %s1527
      $region44: #{a_call__.1} parent=39 // pred_fallthru
        _
    $region40: #{a_call__.1} parent=5 // pred_fallthru
      _
  $region6: #{a_call__.1} parent=0 // loop_footer
    %s13 = sadd.s32 1, %s9
  $region7: #{a_call__.1} parent=0 // loop_footer_branch
    %8 = sbr.rel target = $region3
  $region8: #{a_call__.1} parent=0 // loop_exit
    _

</llo_original>
